<compile_context>
chip_gen: v7x
topology: tpu7x:2x2x1
jax: 0.10.0
libtpu: 0.0.40
codegen_flags: <defaults>
</compile_context>

<pallas_src>
import functools

import numpy as np
import jax
import jax.numpy as jnp
from jax.experimental import pallas as pl
from jax.experimental.pallas import tpu as pltpu

_EPS = 1e-5


# ----------------------------------------------------------------------------
# Host-side (trace-time) constants
# ----------------------------------------------------------------------------
def _interp_matrix_np(out_size, in_size):
    """(out_size, in_size) matrix of UpsamplingBilinear2d (align_corners=True)."""
    if in_size == 1:
        return np.ones((out_size, 1), np.float32)
    src = np.arange(out_size) * (in_size - 1) / (out_size - 1)
    lo = np.clip(np.floor(src).astype(np.int64), 0, in_size - 2)
    frac = (src - lo).astype(np.float32)
    M = np.zeros((out_size, in_size), np.float32)
    M[np.arange(out_size), lo] += 1.0 - frac
    M[np.arange(out_size), lo + 1] += frac
    return M


def _col_masks_np(H, W):
    """(3, H*W) f32 masks; row dw+1 zeroes columns that would wrap across rows."""
    col = np.arange(H * W) % W
    return np.stack(
        [(col >= 1), np.ones(H * W, bool), (col <= W - 2)]).astype(np.float32)


# ----------------------------------------------------------------------------
# In-kernel helper: 3x3 "same" conv as a single im2col matmul (K = 9*C)
# ----------------------------------------------------------------------------
def _conv3x3_im2col(a_cp, w2d, masks, W, compute_dtype):
    """a_cp: (C, P) f32 channels-first, P = H*W row-major.
    w2d:  (Cout, 9*C) weight matrix, column order (kh, kw, ci).
    masks:(3, P) f32 masks for dw = -1, 0, +1.
    Returns (Cout, P) f32 (lane-dense)."""
    C, P = a_cp.shape
    pad = W + 1
    z = jnp.zeros((C, pad), jnp.float32)
    xe = jnp.concatenate([z, a_cp, z], axis=1)          # zero-extended rows
    taps = []
    for dh in (-1, 0, 1):                               # kh = dh + 1
        for dw in (-1, 0, 1):                           # kw = dw + 1
            s = dh * W + dw
            t = xe[:, pad + s: pad + s + P]             # tap[p] = a[p + s] (0 outside)
            if dw != 0:
                t = t * masks[dw + 1:dw + 2, :]         # kill row-wrap columns
            taps.append(t)
    patches = jnp.concatenate(taps, axis=0).astype(compute_dtype)   # (9C, P)
    return jnp.dot(w2d, patches, preferred_element_type=jnp.float32)


# ----------------------------------------------------------------------------
# Kernels
# ----------------------------------------------------------------------------
def _make_stage1_kernel(W, has_skip, compute_dtype):
    # upsample(x) ++ skip -> conv1 -> raw output + per-channel sum / sumsq
    def kernel(x_ref, u_ref, m_ref, *rest):
        if has_skip:
            skip_ref, w_ref, o_ref, sum_ref, ssq_ref = rest
        else:
            w_ref, o_ref, sum_ref, ssq_ref = rest
        # bilinear x2 upsample as one on-chip matmul (reads only the low-res block)
        up = jnp.dot(x_ref[0].astype(jnp.float32), u_ref[...],
                     preferred_element_type=jnp.float32)            # (Cin, P)
        if has_skip:
            a = jnp.concatenate([up, skip_ref[0].astype(jnp.float32)], axis=0)
        else:
            a = up
        acc = _conv3x3_im2col(a, w_ref[...], m_ref[...], W, compute_dtype)
        o_ref[0] = acc.astype(o_ref.dtype)
        sum_ref[0] = jnp.sum(acc, axis=1, keepdims=True)
        ssq_ref[0] = jnp.sum(acc * acc, axis=1, keepdims=True)
    return kernel


def _make_stage2_kernel(W, compute_dtype):
    # fused BN1+ReLU on load -> conv2 -> raw output + per-channel sum / sumsq
    def kernel(y_ref, sc_ref, sh_ref, m_ref, w_ref, o_ref, sum_ref, ssq_ref):
        y = y_ref[0].astype(jnp.float32)                             # (C1, P)
        a = jnp.maximum(y * sc_ref[...] + sh_ref[...], 0.0)
        acc = _conv3x3_im2col(a, w_ref[...], m_ref[...], W, compute_dtype)
        o_ref[0] = acc.astype(o_ref.dtype)
        sum_ref[0] = jnp.sum(acc, axis=1, keepdims=True)
        ssq_ref[0] = jnp.sum(acc * acc, axis=1, keepdims=True)
    return kernel


def _bn_relu_kernel(y_ref, sc_ref, sh_ref, o_ref):
    y = y_ref[0].astype(jnp.float32)
    o_ref[0] = jnp.maximum(y * sc_ref[...] + sh_ref[...], 0.0).astype(o_ref.dtype)


# ----------------------------------------------------------------------------
# Tiny per-channel BN parameter math (operates on (C,1) arrays)
# ----------------------------------------------------------------------------
def _bn_scale_shift(sums, ssqs, gamma, beta, count):
    s = jnp.sum(sums, axis=0)                     # (C, 1)
    ss = jnp.sum(ssqs, axis=0)                    # (C, 1)
    mean = s / count
    var = jnp.maximum(ss / count - mean * mean, 0.0)   # biased batch variance
    inv = jax.lax.rsqrt(var + _EPS)
    scale = gamma.reshape(-1, 1) * inv
    shift = beta.reshape(-1, 1) - mean * scale
    return scale, shift


# ----------------------------------------------------------------------------
# DecoderBlock forward (NCHW in / NCHW out, like the PyTorch module)
# ----------------------------------------------------------------------------
@functools.partial(jax.jit, static_argnames=("compute_dtype",))
def decoder_block_forward(x_nchw, skip_nchw, w1, g1, b1, w2, g2, b2,
                          compute_dtype=jnp.float32):
    cdt = jnp.dtype(compute_dtype)
    N, Cin, H0, W0 = x_nchw.shape
    H, W = 2 * H0, 2 * W0
    P0, P = H0 * W0, H * W
    Cout = w1.shape[-1]
    has_skip = skip_nchw is not None
    Cskip = skip_nchw.shape[1] if has_skip else 0
    Ctot = Cin + Cskip

    # TODO(synk): at production spatial sizes, apply the upsample separably and
    # add a spatial grid axis (and set vmem_limit_bytes) so blocks fit v7x's
    # 64 MiB VMEM; the kron matrix below is only intended for small tiles.
    ut = jnp.asarray(
        np.kron(_interp_matrix_np(H, H0), _interp_matrix_np(W, W0)).T)  # (P0, P)
    masks = jnp.asarray(_col_masks_np(H, W))                            # (3, P)
    w1t = w1.reshape(9 * Ctot, Cout).T.astype(cdt)                      # (Cout, 9*Ctot)
    w2t = w2.reshape(9 * Cout, Cout).T.astype(cdt)                      # (Cout, 9*Cout)

    x_cp = x_nchw.reshape(N, Cin, P0)                                   # NCHW is already C-first
    params = pltpu.CompilerParams(dimension_semantics=("parallel",))

    stage_out_specs = (pl.BlockSpec((1, Cout, P), lambda n: (n, 0, 0)),
                       pl.BlockSpec((1, Cout, 1), lambda n: (n, 0, 0)),
                       pl.BlockSpec((1, Cout, 1), lambda n: (n, 0, 0)))

    def stage_out_shape(dtype):
        return (jax.ShapeDtypeStruct((N, Cout, P), dtype),
                jax.ShapeDtypeStruct((N, Cout, 1), jnp.float32),
                jax.ShapeDtypeStruct((N, Cout, 1), jnp.float32))

    # ---- stage 1: upsample + skip-concat + conv1 + BN1 statistics -----------
    inputs = [x_cp, ut, masks]
    in_specs = [pl.BlockSpec((1, Cin, P0), lambda n: (n, 0, 0)),
                pl.BlockSpec((P0, P), lambda n: (0, 0)),
                pl.BlockSpec((3, P), lambda n: (0, 0))]
    if has_skip:
        inputs.append(skip_nchw.reshape(N, Cskip, P))
        in_specs.append(pl.BlockSpec((1, Cskip, P), lambda n: (n, 0, 0)))
    inputs.append(w1t)
    in_specs.append(pl.BlockSpec((Cout, 9 * Ctot), lambda n: (0, 0)))

    y1, s1, q1 = pl.pallas_call(
        _make_stage1_kernel(W, has_skip, cdt),
        grid=(N,),
        in_specs=in_specs,
        out_specs=stage_out_specs,
        out_shape=stage_out_shape(cdt),
        compiler_params=params,
    )(*inputs)
    scale1, shift1 = _bn_scale_shift(s1, q1, g1, b1, N * P)

    # ---- stage 2: fused BN1+ReLU -> conv2 + BN2 statistics -------------------
    y2, s2, q2 = pl.pallas_call(
        _make_stage2_kernel(W, cdt),
        grid=(N,),
        in_specs=[pl.BlockSpec((1, Cout, P), lambda n: (n, 0, 0)),
                  pl.BlockSpec((Cout, 1), lambda n: (0, 0)),
                  pl.BlockSpec((Cout, 1), lambda n: (0, 0)),
                  pl.BlockSpec((3, P), lambda n: (0, 0)),
                  pl.BlockSpec((Cout, 9 * Cout), lambda n: (0, 0))],
        out_specs=stage_out_specs,
        out_shape=stage_out_shape(cdt),
        compiler_params=params,
    )(y1, scale1, shift1, masks, w2t)
    scale2, shift2 = _bn_scale_shift(s2, q2, g2, b2, N * P)

    # ---- stage 3: fused BN2 + ReLU -> final NCHW output ----------------------
    out = pl.pallas_call(
        _bn_relu_kernel,
        grid=(N,),
        in_specs=[pl.BlockSpec((1, Cout, P), lambda n: (n, 0, 0)),
                  pl.BlockSpec((Cout, 1), lambda n: (0, 0)),
                  pl.BlockSpec((Cout, 1), lambda n: (0, 0))],
        out_specs=pl.BlockSpec((1, Cout, P), lambda n: (n, 0, 0)),
        out_shape=jax.ShapeDtypeStruct((N, Cout, P), jnp.float32),
        compiler_params=params,
    )(y2, scale2, shift2)

    return out.reshape(N, Cout, H, W)


# ----------------------------------------------------------------------------
# Pure-JAX (XLA) reference for correctness checking
# ----------------------------------------------------------------------------
def _reference_forward(x_nchw, skip_nchw, w1, g1, b1, w2, g2, b2):
    x = jnp.transpose(x_nchw, (0, 2, 3, 1))
    _, H0, W0, _ = x.shape
    Mh = jnp.asarray(_interp_matrix_np(2 * H0, H0))
    Mw = jnp.asarray(_interp_matrix_np(2 * W0, W0))
    x = jnp.einsum('ip,jq,npqc->nijc', Mh, Mw, x)
    if skip_nchw is not None:
        x = jnp.concatenate([x, jnp.transpose(skip_nchw, (0, 2, 3, 1))], axis=-1)

    def conv_bn_relu(z, w, g, b):
        y = jax.lax.conv_general_dilated(
            z, w, (1, 1), 'SAME', dimension_numbers=('NHWC', 'HWIO', 'NHWC'))
        mean = jnp.mean(y, axis=(0, 1, 2), keepdims=True)
        var = jnp.mean(jnp.square(y - mean), axis=(0, 1, 2), keepdims=True)
        return jnp.maximum((y - mean) * jax.lax.rsqrt(var + _EPS) * g + b, 0.0)

    x = conv_bn_relu(x, w1, g1, b1)
    x = conv_bn_relu(x, w2, g2, b2)
    return jnp.transpose(x, (0, 3, 1, 2))


if __name__ == "__main__":
    key = jax.random.PRNGKey(0)
    k1, k2, k3, k4 = jax.random.split(key, 4)

    # DecoderBlock(in_channels=8, out_channels=8, skip_channels=4), small input
    N, Cin, Cskip, Cout, H0, W0 = 2, 8, 4, 8, 8, 8
    x = jax.random.normal(k1, (N, Cin, H0, W0), jnp.float32)            # NCHW
    skip = jax.random.normal(k2, (N, Cskip, 2 * H0, 2 * W0), jnp.float32)

    # Conv weights in HWIO, no bias (use_batchnorm=True); BN defaults gamma=1, beta=0.
    w1 = jax.random.normal(k3, (3, 3, Cin + Cskip, Cout), jnp.float32) * 0.1
    w2 = jax.random.normal(k4, (3, 3, Cout, Cout), jnp.float32) * 0.1
    g1 = jnp.ones((Cout,), jnp.float32)
    b1 = jnp.zeros((Cout,), jnp.float32)
    g2 = jnp.ones((Cout,), jnp.float32)
    b2 = jnp.zeros((Cout,), jnp.float32)

    ref = jax.block_until_ready(
        _reference_forward(x, skip, w1, g1, b1, w2, g2, b2))

    # f32 compute path: tight correctness check.
    out = jax.block_until_ready(
        decoder_block_forward(x, skip, w1, g1, b1, w2, g2, b2,
                              compute_dtype=jnp.float32))
    assert out.shape == (N, Cout, 2 * H0, 2 * W0)
    np.testing.assert_allclose(np.asarray(out), np.asarray(ref),
                               atol=1e-3, rtol=1e-3)

    # bf16 MXU / bf16 inter-stage activations (v6e/v7x fast path): loose check,
    # BN statistics and epilogue math stay in f32.
    out_bf16 = jax.block_until_ready(
        decoder_block_forward(x, skip, w1, g1, b1, w2, g2, b2,
                              compute_dtype=jnp.bfloat16))
    np.testing.assert_allclose(np.asarray(out_bf16), np.asarray(ref),
                               atol=1e-1, rtol=1e-1)

    print("KERNEL_OK")
</pallas_src>

<mosaic_0001>
module attributes {stable_mosaic.version = 11 : i64} {
  func.func @kernel(%arg0: i32, %arg1: memref<1x8x64xf32, #tpu.memory_space<vmem>>, %arg2: memref<64x256xf32, #tpu.memory_space<vmem>>, %arg3: memref<3x256xf32, #tpu.memory_space<vmem>>, %arg4: memref<1x4x256xf32, #tpu.memory_space<vmem>>, %arg5: memref<8x108xf32, #tpu.memory_space<vmem>>, %arg6: memref<1x8x256xf32, #tpu.memory_space<vmem>>, %arg7: memref<1x8x1xf32, #tpu.memory_space<vmem>>, %arg8: memref<1x8x1xf32, #tpu.memory_space<vmem>>) attributes {dimension_semantics = [#tpu.dimension_semantics<parallel>], iteration_bounds = array<i64: 2>, scalar_prefetch = 0 : i64, scratch_operands = 0 : i64, tpu.core_type = #tpu.core_type<tc>, window_params = [{transform_indices = @transform_0, window_bounds = array<i64: 1, 8, 64>}, {pipeline_mode = #tpu.pipeline_mode<synchronous>, transform_indices = @transform_1, window_bounds = array<i64: 64, 256>}, {pipeline_mode = #tpu.pipeline_mode<synchronous>, transform_indices = @transform_2, window_bounds = array<i64: 3, 256>}, {transform_indices = @transform_3, window_bounds = array<i64: 1, 4, 256>}, {pipeline_mode = #tpu.pipeline_mode<synchronous>, transform_indices = @transform_4, window_bounds = array<i64: 8, 108>}, {transform_indices = @transform_5, window_bounds = array<i64: 1, 8, 256>}, {transform_indices = @transform_6, window_bounds = array<i64: 1, 8, 1>}, {transform_indices = @transform_7, window_bounds = array<i64: 1, 8, 1>}]} {
    %c0 = arith.constant 0 : index
    %c0_0 = arith.constant 0 : index
    %c0_1 = arith.constant 0 : index
    %0 = vector.load %arg1[%c0, %c0_0, %c0_1] : memref<1x8x64xf32, #tpu.memory_space<vmem>>, vector<1x8x64xf32>
    %1 = vector.shape_cast %0 : vector<1x8x64xf32> to vector<8x64xf32>
    %c0_2 = arith.constant 0 : index
    %c0_3 = arith.constant 0 : index
    %2 = vector.load %arg2[%c0_2, %c0_3] : memref<64x256xf32, #tpu.memory_space<vmem>>, vector<64x256xf32>
    %cst = arith.constant dense<0.000000e+00> : vector<8x256xf32>
    %3 = tpu.matmul %1, %2, %cst {dimension_numbers = #tpu.dot_dimension_numbers<[1], [0], [0], [1], [0, 0, 1, 1], [], []>} : vector<8x64xf32>, vector<64x256xf32>, vector<8x256xf32> -> vector<8x256xf32>
    %c0_4 = arith.constant 0 : index
    %c0_5 = arith.constant 0 : index
    %c0_6 = arith.constant 0 : index
    %4 = vector.load %arg4[%c0_4, %c0_5, %c0_6] : memref<1x4x256xf32, #tpu.memory_space<vmem>>, vector<1x4x256xf32>
    %5 = vector.shape_cast %4 : vector<1x4x256xf32> to vector<4x256xf32>
    %6 = tpu.concatenate %3, %5 in 0 : vector<8x256xf32>, vector<4x256xf32> -> vector<12x256xf32>
    %c0_7 = arith.constant 0 : index
    %c0_8 = arith.constant 0 : index
    %7 = vector.load %arg5[%c0_7, %c0_8] : memref<8x108xf32, #tpu.memory_space<vmem>>, vector<8x108xf32>
    %c0_9 = arith.constant 0 : index
    %c0_10 = arith.constant 0 : index
    %8 = vector.load %arg3[%c0_9, %c0_10] : memref<3x256xf32, #tpu.memory_space<vmem>>, vector<3x256xf32>
    %cst_11 = arith.constant 0.000000e+00 : f32
    %9 = vector.broadcast %cst_11 : f32 to vector<12x17xf32>
    %10 = tpu.concatenate %9, %6, %9 in 1 : vector<12x17xf32>, vector<12x256xf32>, vector<12x17xf32> -> vector<12x290xf32>
    %11 = vector.extract_strided_slice %10 {offsets = [0, 0], sizes = [12, 256], strides = [1, 1]} : vector<12x290xf32> to vector<12x256xf32>
    %12 = vector.extract_strided_slice %8 {offsets = [0, 0], sizes = [1, 256], strides = [1, 1]} : vector<3x256xf32> to vector<1x256xf32>
    %13 = vector.broadcast %12 : vector<1x256xf32> to vector<12x256xf32>
    %14 = arith.mulf %11, %13 : vector<12x256xf32>
    %15 = vector.extract_strided_slice %10 {offsets = [0, 1], sizes = [12, 256], strides = [1, 1]} : vector<12x290xf32> to vector<12x256xf32>
    %16 = vector.extract_strided_slice %10 {offsets = [0, 2], sizes = [12, 256], strides = [1, 1]} : vector<12x290xf32> to vector<12x256xf32>
    %17 = vector.extract_strided_slice %8 {offsets = [2, 0], sizes = [1, 256], strides = [1, 1]} : vector<3x256xf32> to vector<1x256xf32>
    %18 = vector.broadcast %17 : vector<1x256xf32> to vector<12x256xf32>
    %19 = arith.mulf %16, %18 : vector<12x256xf32>
    %20 = vector.extract_strided_slice %10 {offsets = [0, 16], sizes = [12, 256], strides = [1, 1]} : vector<12x290xf32> to vector<12x256xf32>
    %21 = vector.extract_strided_slice %8 {offsets = [0, 0], sizes = [1, 256], strides = [1, 1]} : vector<3x256xf32> to vector<1x256xf32>
    %22 = vector.broadcast %21 : vector<1x256xf32> to vector<12x256xf32>
    %23 = arith.mulf %20, %22 : vector<12x256xf32>
    %24 = vector.extract_strided_slice %10 {offsets = [0, 17], sizes = [12, 256], strides = [1, 1]} : vector<12x290xf32> to vector<12x256xf32>
    %25 = vector.extract_strided_slice %10 {offsets = [0, 18], sizes = [12, 256], strides = [1, 1]} : vector<12x290xf32> to vector<12x256xf32>
    %26 = vector.extract_strided_slice %8 {offsets = [2, 0], sizes = [1, 256], strides = [1, 1]} : vector<3x256xf32> to vector<1x256xf32>
    %27 = vector.broadcast %26 : vector<1x256xf32> to vector<12x256xf32>
    %28 = arith.mulf %25, %27 : vector<12x256xf32>
    %29 = vector.extract_strided_slice %10 {offsets = [0, 32], sizes = [12, 256], strides = [1, 1]} : vector<12x290xf32> to vector<12x256xf32>
    %30 = vector.extract_strided_slice %8 {offsets = [0, 0], sizes = [1, 256], strides = [1, 1]} : vector<3x256xf32> to vector<1x256xf32>
    %31 = vector.broadcast %30 : vector<1x256xf32> to vector<12x256xf32>
    %32 = arith.mulf %29, %31 : vector<12x256xf32>
    %33 = vector.extract_strided_slice %10 {offsets = [0, 33], sizes = [12, 256], strides = [1, 1]} : vector<12x290xf32> to vector<12x256xf32>
    %34 = vector.extract_strided_slice %10 {offsets = [0, 34], sizes = [12, 256], strides = [1, 1]} : vector<12x290xf32> to vector<12x256xf32>
    %35 = vector.extract_strided_slice %8 {offsets = [2, 0], sizes = [1, 256], strides = [1, 1]} : vector<3x256xf32> to vector<1x256xf32>
    %36 = vector.broadcast %35 : vector<1x256xf32> to vector<12x256xf32>
    %37 = arith.mulf %34, %36 : vector<12x256xf32>
    %38 = tpu.concatenate %14, %15, %19, %23, %24, %28, %32, %33, %37 in 0 : vector<12x256xf32>, vector<12x256xf32>, vector<12x256xf32>, vector<12x256xf32>, vector<12x256xf32>, vector<12x256xf32>, vector<12x256xf32>, vector<12x256xf32>, vector<12x256xf32> -> vector<108x256xf32>
    %cst_12 = arith.constant dense<0.000000e+00> : vector<8x256xf32>
    %39 = tpu.matmul %7, %38, %cst_12 {dimension_numbers = #tpu.dot_dimension_numbers<[1], [0], [0], [1], [0, 0, 1, 1], [], []>} : vector<8x108xf32>, vector<108x256xf32>, vector<8x256xf32> -> vector<8x256xf32>
    %c0_13 = arith.constant 0 : index
    %c0_14 = arith.constant 0 : index
    %c0_15 = arith.constant 0 : index
    %40 = vector.load %arg6[%c0_13, %c0_14, %c0_15] : memref<1x8x256xf32, #tpu.memory_space<vmem>>, vector<1x8x256xf32>
    %41 = vector.shape_cast %40 : vector<1x8x256xf32> to vector<8x256xf32>
    %42 = vector.shape_cast %39 : vector<8x256xf32> to vector<1x8x256xf32>
    tpu.vector_store %arg6[%c0_13, %c0_14, %c0_15], %42 {strides = array<i32>} : memref<1x8x256xf32, #tpu.memory_space<vmem>>, vector<1x8x256xf32>,
    %cst_16 = arith.constant dense<0.000000e+00> : vector<8xf32>
    %43 = vector.multi_reduction <add>, %39, %cst_16 [1] : vector<8x256xf32> to vector<8xf32>
    %44 = vector.shape_cast %43 : vector<8xf32> to vector<8x1xf32>
    %c0_17 = arith.constant 0 : index
    %c0_18 = arith.constant 0 : index
    %c0_19 = arith.constant 0 : index
    %45 = vector.load %arg7[%c0_17, %c0_18, %c0_19] : memref<1x8x1xf32, #tpu.memory_space<vmem>>, vector<1x8x1xf32>
    %46 = vector.shape_cast %45 : vector<1x8x1xf32> to vector<8x1xf32>
    %47 = vector.shape_cast %44 : vector<8x1xf32> to vector<1x8x1xf32>
    tpu.vector_store %arg7[%c0_17, %c0_18, %c0_19], %47 {strides = array<i32>} : memref<1x8x1xf32, #tpu.memory_space<vmem>>, vector<1x8x1xf32>,
    %48 = arith.mulf %39, %39 : vector<8x256xf32>
    %cst_20 = arith.constant dense<0.000000e+00> : vector<8xf32>
    %49 = vector.multi_reduction <add>, %48, %cst_20 [1] : vector<8x256xf32> to vector<8xf32>
    %50 = vector.shape_cast %49 : vector<8xf32> to vector<8x1xf32>
    %c0_21 = arith.constant 0 : index
    %c0_22 = arith.constant 0 : index
    %c0_23 = arith.constant 0 : index
    %51 = vector.load %arg8[%c0_21, %c0_22, %c0_23] : memref<1x8x1xf32, #tpu.memory_space<vmem>>, vector<1x8x1xf32>
    %52 = vector.shape_cast %51 : vector<1x8x1xf32> to vector<8x1xf32>
    %53 = vector.shape_cast %50 : vector<8x1xf32> to vector<1x8x1xf32>
    tpu.vector_store %arg8[%c0_21, %c0_22, %c0_23], %53 {strides = array<i32>} : memref<1x8x1xf32, #tpu.memory_space<vmem>>, vector<1x8x1xf32>,
    return
  }
  func.func @transform_0(%arg0: i32) -> (i32, i32, i32) {
    %c0_i32 = arith.constant 0 : i32
    %c0_i32_0 = arith.constant 0 : i32
    %c0_i32_1 = arith.constant 0 : i32
    return %arg0, %c0_i32, %c0_i32_0 : i32, i32, i32
  }
  func.func @transform_1(%arg0: i32) -> (i32, i32) {
    %c0_i32 = arith.constant 0 : i32
    %c0_i32_0 = arith.constant 0 : i32
    %c0_i32_1 = arith.constant 0 : i32
    return %c0_i32, %c0_i32_0 : i32, i32
  }
  func.func @transform_2(%arg0: i32) -> (i32, i32) {
    %c0_i32 = arith.constant 0 : i32
    %c0_i32_0 = arith.constant 0 : i32
    %c0_i32_1 = arith.constant 0 : i32
    return %c0_i32, %c0_i32_0 : i32, i32
  }
  func.func @transform_3(%arg0: i32) -> (i32, i32, i32) {
    %c0_i32 = arith.constant 0 : i32
    %c0_i32_0 = arith.constant 0 : i32
    %c0_i32_1 = arith.constant 0 : i32
    return %arg0, %c0_i32, %c0_i32_0 : i32, i32, i32
  }
  func.func @transform_4(%arg0: i32) -> (i32, i32) {
    %c0_i32 = arith.constant 0 : i32
    %c0_i32_0 = arith.constant 0 : i32
    %c0_i32_1 = arith.constant 0 : i32
    return %c0_i32, %c0_i32_0 : i32, i32
  }
  func.func @transform_5(%arg0: i32) -> (i32, i32, i32) {
    %c0_i32 = arith.constant 0 : i32
    %c0_i32_0 = arith.constant 0 : i32
    %c0_i32_1 = arith.constant 0 : i32
    return %arg0, %c0_i32, %c0_i32_0 : i32, i32, i32
  }
  func.func @transform_6(%arg0: i32) -> (i32, i32, i32) {
    %c0_i32 = arith.constant 0 : i32
    %c0_i32_0 = arith.constant 0 : i32
    %c0_i32_1 = arith.constant 0 : i32
    return %arg0, %c0_i32, %c0_i32_0 : i32, i32, i32
  }
  func.func @transform_7(%arg0: i32) -> (i32, i32, i32) {
    %c0_i32 = arith.constant 0 : i32
    %c0_i32_0 = arith.constant 0 : i32
    %c0_i32_1 = arith.constant 0 : i32
    return %arg0, %c0_i32, %c0_i32_0 : i32, i32, i32
  }
}

module attributes {stable_mosaic.version = 11 : i64} {
  func.func @_bn_relu_kernel(%arg0: i32, %arg1: memref<1x8x256xf32, #tpu.memory_space<vmem>>, %arg2: memref<8x1xf32, #tpu.memory_space<vmem>>, %arg3: memref<8x1xf32, #tpu.memory_space<vmem>>, %arg4: memref<1x8x256xf32, #tpu.memory_space<vmem>>) attributes {dimension_semantics = [#tpu.dimension_semantics<parallel>], iteration_bounds = array<i64: 2>, scalar_prefetch = 0 : i64, scratch_operands = 0 : i64, tpu.core_type = #tpu.core_type<tc>, window_params = [{transform_indices = @transform_0, window_bounds = array<i64: 1, 8, 256>}, {pipeline_mode = #tpu.pipeline_mode<synchronous>, transform_indices = @transform_1, window_bounds = array<i64: 8, 1>}, {pipeline_mode = #tpu.pipeline_mode<synchronous>, transform_indices = @transform_2, window_bounds = array<i64: 8, 1>}, {transform_indices = @transform_3, window_bounds = array<i64: 1, 8, 256>}]} {
    %c0 = arith.constant 0 : index
    %c0_0 = arith.constant 0 : index
    %c0_1 = arith.constant 0 : index
    %0 = vector.load %arg1[%c0, %c0_0, %c0_1] : memref<1x8x256xf32, #tpu.memory_space<vmem>>, vector<1x8x256xf32>
    %1 = vector.shape_cast %0 : vector<1x8x256xf32> to vector<8x256xf32>
    %c0_2 = arith.constant 0 : index
    %c0_3 = arith.constant 0 : index
    %2 = vector.load %arg2[%c0_2, %c0_3] : memref<8x1xf32, #tpu.memory_space<vmem>>, vector<8x1xf32>
    %3 = vector.broadcast %2 : vector<8x1xf32> to vector<8x256xf32>
    %4 = arith.mulf %1, %3 : vector<8x256xf32>
    %c0_4 = arith.constant 0 : index
    %c0_5 = arith.constant 0 : index
    %5 = vector.load %arg3[%c0_4, %c0_5] : memref<8x1xf32, #tpu.memory_space<vmem>>, vector<8x1xf32>
    %6 = vector.broadcast %5 : vector<8x1xf32> to vector<8x256xf32>
    %7 = arith.addf %4, %6 : vector<8x256xf32>
    %cst = arith.constant 0.000000e+00 : f32
    %8 = vector.broadcast %cst : f32 to vector<8x256xf32>
    %9 = arith.maximumf %7, %8 : vector<8x256xf32>
    %c0_6 = arith.constant 0 : index
    %c0_7 = arith.constant 0 : index
    %c0_8 = arith.constant 0 : index
    %10 = vector.load %arg4[%c0_6, %c0_7, %c0_8] : memref<1x8x256xf32, #tpu.memory_space<vmem>>, vector<1x8x256xf32>
    %11 = vector.shape_cast %10 : vector<1x8x256xf32> to vector<8x256xf32>
    %12 = vector.shape_cast %9 : vector<8x256xf32> to vector<1x8x256xf32>
    tpu.vector_store %arg4[%c0_6, %c0_7, %c0_8], %12 {strides = array<i32>} : memref<1x8x256xf32, #tpu.memory_space<vmem>>, vector<1x8x256xf32>,
    return
  }
  func.func @transform_0(%arg0: i32) -> (i32, i32, i32) {
    %c0_i32 = arith.constant 0 : i32
    %c0_i32_0 = arith.constant 0 : i32
    %c0_i32_1 = arith.constant 0 : i32
    return %arg0, %c0_i32, %c0_i32_0 : i32, i32, i32
  }
  func.func @transform_1(%arg0: i32) -> (i32, i32) {
    %c0_i32 = arith.constant 0 : i32
    %c0_i32_0 = arith.constant 0 : i32
    %c0_i32_1 = arith.constant 0 : i32
    return %c0_i32, %c0_i32_0 : i32, i32
  }
  func.func @transform_2(%arg0: i32) -> (i32, i32) {
    %c0_i32 = arith.constant 0 : i32
    %c0_i32_0 = arith.constant 0 : i32
    %c0_i32_1 = arith.constant 0 : i32
    return %c0_i32, %c0_i32_0 : i32, i32
  }
  func.func @transform_3(%arg0: i32) -> (i32, i32, i32) {
    %c0_i32 = arith.constant 0 : i32
    %c0_i32_0 = arith.constant 0 : i32
    %c0_i32_1 = arith.constant 0 : i32
    return %arg0, %c0_i32, %c0_i32_0 : i32, i32, i32
  }
}

module attributes {stable_mosaic.version = 11 : i64} {
  func.func @kernel(%arg0: i32, %arg1: memref<1x8x256xf32, #tpu.memory_space<vmem>>, %arg2: memref<8x1xf32, #tpu.memory_space<vmem>>, %arg3: memref<8x1xf32, #tpu.memory_space<vmem>>, %arg4: memref<3x256xf32, #tpu.memory_space<vmem>>, %arg5: memref<8x72xf32, #tpu.memory_space<vmem>>, %arg6: memref<1x8x256xf32, #tpu.memory_space<vmem>>, %arg7: memref<1x8x1xf32, #tpu.memory_space<vmem>>, %arg8: memref<1x8x1xf32, #tpu.memory_space<vmem>>) attributes {dimension_semantics = [#tpu.dimension_semantics<parallel>], iteration_bounds = array<i64: 2>, scalar_prefetch = 0 : i64, scratch_operands = 0 : i64, tpu.core_type = #tpu.core_type<tc>, window_params = [{transform_indices = @transform_0, window_bounds = array<i64: 1, 8, 256>}, {pipeline_mode = #tpu.pipeline_mode<synchronous>, transform_indices = @transform_1, window_bounds = array<i64: 8, 1>}, {pipeline_mode = #tpu.pipeline_mode<synchronous>, transform_indices = @transform_2, window_bounds = array<i64: 8, 1>}, {pipeline_mode = #tpu.pipeline_mode<synchronous>, transform_indices = @transform_3, window_bounds = array<i64: 3, 256>}, {pipeline_mode = #tpu.pipeline_mode<synchronous>, transform_indices = @transform_4, window_bounds = array<i64: 8, 72>}, {transform_indices = @transform_5, window_bounds = array<i64: 1, 8, 256>}, {transform_indices = @transform_6, window_bounds = array<i64: 1, 8, 1>}, {transform_indices = @transform_7, window_bounds = array<i64: 1, 8, 1>}]} {
    %c0 = arith.constant 0 : index
    %c0_0 = arith.constant 0 : index
    %c0_1 = arith.constant 0 : index
    %0 = vector.load %arg1[%c0, %c0_0, %c0_1] : memref<1x8x256xf32, #tpu.memory_space<vmem>>, vector<1x8x256xf32>
    %1 = vector.shape_cast %0 : vector<1x8x256xf32> to vector<8x256xf32>
    %c0_2 = arith.constant 0 : index
    %c0_3 = arith.constant 0 : index
    %2 = vector.load %arg2[%c0_2, %c0_3] : memref<8x1xf32, #tpu.memory_space<vmem>>, vector<8x1xf32>
    %3 = vector.broadcast %2 : vector<8x1xf32> to vector<8x256xf32>
    %4 = arith.mulf %1, %3 : vector<8x256xf32>
    %c0_4 = arith.constant 0 : index
    %c0_5 = arith.constant 0 : index
    %5 = vector.load %arg3[%c0_4, %c0_5] : memref<8x1xf32, #tpu.memory_space<vmem>>, vector<8x1xf32>
    %6 = vector.broadcast %5 : vector<8x1xf32> to vector<8x256xf32>
    %7 = arith.addf %4, %6 : vector<8x256xf32>
    %cst = arith.constant 0.000000e+00 : f32
    %8 = vector.broadcast %cst : f32 to vector<8x256xf32>
    %9 = arith.maximumf %7, %8 : vector<8x256xf32>
    %c0_6 = arith.constant 0 : index
    %c0_7 = arith.constant 0 : index
    %10 = vector.load %arg5[%c0_6, %c0_7] : memref<8x72xf32, #tpu.memory_space<vmem>>, vector<8x72xf32>
    %c0_8 = arith.constant 0 : index
    %c0_9 = arith.constant 0 : index
    %11 = vector.load %arg4[%c0_8, %c0_9] : memref<3x256xf32, #tpu.memory_space<vmem>>, vector<3x256xf32>
    %cst_10 = arith.constant 0.000000e+00 : f32
    %12 = vector.broadcast %cst_10 : f32 to vector<8x17xf32>
    %13 = tpu.concatenate %12, %9, %12 in 1 : vector<8x17xf32>, vector<8x256xf32>, vector<8x17xf32> -> vector<8x290xf32>
    %14 = vector.extract_strided_slice %13 {offsets = [0, 0], sizes = [8, 256], strides = [1, 1]} : vector<8x290xf32> to vector<8x256xf32>
    %15 = vector.extract_strided_slice %11 {offsets = [0, 0], sizes = [1, 256], strides = [1, 1]} : vector<3x256xf32> to vector<1x256xf32>
    %16 = vector.broadcast %15 : vector<1x256xf32> to vector<8x256xf32>
    %17 = arith.mulf %14, %16 : vector<8x256xf32>
    %18 = vector.extract_strided_slice %13 {offsets = [0, 1], sizes = [8, 256], strides = [1, 1]} : vector<8x290xf32> to vector<8x256xf32>
    %19 = vector.extract_strided_slice %13 {offsets = [0, 2], sizes = [8, 256], strides = [1, 1]} : vector<8x290xf32> to vector<8x256xf32>
    %20 = vector.extract_strided_slice %11 {offsets = [2, 0], sizes = [1, 256], strides = [1, 1]} : vector<3x256xf32> to vector<1x256xf32>
    %21 = vector.broadcast %20 : vector<1x256xf32> to vector<8x256xf32>
    %22 = arith.mulf %19, %21 : vector<8x256xf32>
    %23 = vector.extract_strided_slice %13 {offsets = [0, 16], sizes = [8, 256], strides = [1, 1]} : vector<8x290xf32> to vector<8x256xf32>
    %24 = vector.extract_strided_slice %11 {offsets = [0, 0], sizes = [1, 256], strides = [1, 1]} : vector<3x256xf32> to vector<1x256xf32>
    %25 = vector.broadcast %24 : vector<1x256xf32> to vector<8x256xf32>
    %26 = arith.mulf %23, %25 : vector<8x256xf32>
    %27 = vector.extract_strided_slice %13 {offsets = [0, 17], sizes = [8, 256], strides = [1, 1]} : vector<8x290xf32> to vector<8x256xf32>
    %28 = vector.extract_strided_slice %13 {offsets = [0, 18], sizes = [8, 256], strides = [1, 1]} : vector<8x290xf32> to vector<8x256xf32>
    %29 = vector.extract_strided_slice %11 {offsets = [2, 0], sizes = [1, 256], strides = [1, 1]} : vector<3x256xf32> to vector<1x256xf32>
    %30 = vector.broadcast %29 : vector<1x256xf32> to vector<8x256xf32>
    %31 = arith.mulf %28, %30 : vector<8x256xf32>
    %32 = vector.extract_strided_slice %13 {offsets = [0, 32], sizes = [8, 256], strides = [1, 1]} : vector<8x290xf32> to vector<8x256xf32>
    %33 = vector.extract_strided_slice %11 {offsets = [0, 0], sizes = [1, 256], strides = [1, 1]} : vector<3x256xf32> to vector<1x256xf32>
    %34 = vector.broadcast %33 : vector<1x256xf32> to vector<8x256xf32>
    %35 = arith.mulf %32, %34 : vector<8x256xf32>
    %36 = vector.extract_strided_slice %13 {offsets = [0, 33], sizes = [8, 256], strides = [1, 1]} : vector<8x290xf32> to vector<8x256xf32>
    %37 = vector.extract_strided_slice %13 {offsets = [0, 34], sizes = [8, 256], strides = [1, 1]} : vector<8x290xf32> to vector<8x256xf32>
    %38 = vector.extract_strided_slice %11 {offsets = [2, 0], sizes = [1, 256], strides = [1, 1]} : vector<3x256xf32> to vector<1x256xf32>
    %39 = vector.broadcast %38 : vector<1x256xf32> to vector<8x256xf32>
    %40 = arith.mulf %37, %39 : vector<8x256xf32>
    %41 = tpu.concatenate %17, %18, %22, %26, %27, %31, %35, %36, %40 in 0 : vector<8x256xf32>, vector<8x256xf32>, vector<8x256xf32>, vector<8x256xf32>, vector<8x256xf32>, vector<8x256xf32>, vector<8x256xf32>, vector<8x256xf32>, vector<8x256xf32> -> vector<72x256xf32>
    %cst_11 = arith.constant dense<0.000000e+00> : vector<8x256xf32>
    %42 = tpu.matmul %10, %41, %cst_11 {dimension_numbers = #tpu.dot_dimension_numbers<[1], [0], [0], [1], [0, 0, 1, 1], [], []>} : vector<8x72xf32>, vector<72x256xf32>, vector<8x256xf32> -> vector<8x256xf32>
    %c0_12 = arith.constant 0 : index
    %c0_13 = arith.constant 0 : index
    %c0_14 = arith.constant 0 : index
    %43 = vector.load %arg6[%c0_12, %c0_13, %c0_14] : memref<1x8x256xf32, #tpu.memory_space<vmem>>, vector<1x8x256xf32>
    %44 = vector.shape_cast %43 : vector<1x8x256xf32> to vector<8x256xf32>
    %45 = vector.shape_cast %42 : vector<8x256xf32> to vector<1x8x256xf32>
    tpu.vector_store %arg6[%c0_12, %c0_13, %c0_14], %45 {strides = array<i32>} : memref<1x8x256xf32, #tpu.memory_space<vmem>>, vector<1x8x256xf32>,
    %cst_15 = arith.constant dense<0.000000e+00> : vector<8xf32>
    %46 = vector.multi_reduction <add>, %42, %cst_15 [1] : vector<8x256xf32> to vector<8xf32>
    %47 = vector.shape_cast %46 : vector<8xf32> to vector<8x1xf32>
    %c0_16 = arith.constant 0 : index
    %c0_17 = arith.constant 0 : index
    %c0_18 = arith.constant 0 : index
    %48 = vector.load %arg7[%c0_16, %c0_17, %c0_18] : memref<1x8x1xf32, #tpu.memory_space<vmem>>, vector<1x8x1xf32>
    %49 = vector.shape_cast %48 : vector<1x8x1xf32> to vector<8x1xf32>
    %50 = vector.shape_cast %47 : vector<8x1xf32> to vector<1x8x1xf32>
    tpu.vector_store %arg7[%c0_16, %c0_17, %c0_18], %50 {strides = array<i32>} : memref<1x8x1xf32, #tpu.memory_space<vmem>>, vector<1x8x1xf32>,
    %51 = arith.mulf %42, %42 : vector<8x256xf32>
    %cst_19 = arith.constant dense<0.000000e+00> : vector<8xf32>
    %52 = vector.multi_reduction <add>, %51, %cst_19 [1] : vector<8x256xf32> to vector<8xf32>
    %53 = vector.shape_cast %52 : vector<8xf32> to vector<8x1xf32>
    %c0_20 = arith.constant 0 : index
    %c0_21 = arith.constant 0 : index
    %c0_22 = arith.constant 0 : index
    %54 = vector.load %arg8[%c0_20, %c0_21, %c0_22] : memref<1x8x1xf32, #tpu.memory_space<vmem>>, vector<1x8x1xf32>
    %55 = vector.shape_cast %54 : vector<1x8x1xf32> to vector<8x1xf32>
    %56 = vector.shape_cast %53 : vector<8x1xf32> to vector<1x8x1xf32>
    tpu.vector_store %arg8[%c0_20, %c0_21, %c0_22], %56 {strides = array<i32>} : memref<1x8x1xf32, #tpu.memory_space<vmem>>, vector<1x8x1xf32>,
    return
  }
  func.func @transform_0(%arg0: i32) -> (i32, i32, i32) {
    %c0_i32 = arith.constant 0 : i32
    %c0_i32_0 = arith.constant 0 : i32
    %c0_i32_1 = arith.constant 0 : i32
    return %arg0, %c0_i32, %c0_i32_0 : i32, i32, i32
  }
  func.func @transform_1(%arg0: i32) -> (i32, i32) {
    %c0_i32 = arith.constant 0 : i32
    %c0_i32_0 = arith.constant 0 : i32
    %c0_i32_1 = arith.constant 0 : i32
    return %c0_i32, %c0_i32_0 : i32, i32
  }
  func.func @transform_2(%arg0: i32) -> (i32, i32) {
    %c0_i32 = arith.constant 0 : i32
    %c0_i32_0 = arith.constant 0 : i32
    %c0_i32_1 = arith.constant 0 : i32
    return %c0_i32, %c0_i32_0 : i32, i32
  }
  func.func @transform_3(%arg0: i32) -> (i32, i32) {
    %c0_i32 = arith.constant 0 : i32
    %c0_i32_0 = arith.constant 0 : i32
    %c0_i32_1 = arith.constant 0 : i32
    return %c0_i32, %c0_i32_0 : i32, i32
  }
  func.func @transform_4(%arg0: i32) -> (i32, i32) {
    %c0_i32 = arith.constant 0 : i32
    %c0_i32_0 = arith.constant 0 : i32
    %c0_i32_1 = arith.constant 0 : i32
    return %c0_i32, %c0_i32_0 : i32, i32
  }
  func.func @transform_5(%arg0: i32) -> (i32, i32, i32) {
    %c0_i32 = arith.constant 0 : i32
    %c0_i32_0 = arith.constant 0 : i32
    %c0_i32_1 = arith.constant 0 : i32
    return %arg0, %c0_i32, %c0_i32_0 : i32, i32, i32
  }
  func.func @transform_6(%arg0: i32) -> (i32, i32, i32) {
    %c0_i32 = arith.constant 0 : i32
    %c0_i32_0 = arith.constant 0 : i32
    %c0_i32_1 = arith.constant 0 : i32
    return %arg0, %c0_i32, %c0_i32_0 : i32, i32, i32
  }
  func.func @transform_7(%arg0: i32) -> (i32, i32, i32) {
    %c0_i32 = arith.constant 0 : i32
    %c0_i32_0 = arith.constant 0 : i32
    %c0_i32_1 = arith.constant 0 : i32
    return %arg0, %c0_i32, %c0_i32_0 : i32, i32, i32
  }
}

</mosaic_0001>

<llo_original>
// kernel: decoder_block_forward.5
$region0: #{decoder_block_forward.5}
  #allocation0 [shape = 'u32[]', space=smem, size = 0x4, offset = 0x4, fixed_abs, tag = 'smem constant byte address 0x4 - core index']
  #allocation1 [shape = 'u32[144,128]{1,0:T(1,128)}', space=vmem, size = 0x12000, scoped, tag = 'internal scratch']
  %s0 = inlined_call_operand.vmem [shape: f32[2,8,256], index: 0, kind: input, shape index: {}]
  %s1 = inlined_call_operand.vmem [shape: f32[8,1], index: 1, kind: input, shape index: {}]
  %s2 = inlined_call_operand.vmem [shape: f32[8,1], index: 2, kind: input, shape index: {}]
  %s3 = inlined_call_operand.vmem [shape: f32[2,8,256], index: 3, kind: output, shape index: {}]
  %s4 = sld [smem:[#allocation0]]
  $region45: #{decoder_block_forward.5} parent=0
    _
  %s6 = ssub.s32 1, %s4
  %s7 = scalar_select 0, %s6, %s4
  loop: start=0, step=1, limit=4
  $region2: #{decoder_block_forward.5} parent=0 // loop_pre_header
    _
  $region3: #{decoder_block_forward.5} parent=0 // loop_header
    %s9 = sphi 0, %s13
    %p10 = scmp.ge.s32.totalorder %s9, 4
    %s19 = sphi 0, %s21
    %s22 = sphi 0, %s19
    %s23 = sphi 0, %s22
    %s39 = sphi 0, %s23
    %s43 = sphi 0, %s43
    %s45 = sphi 0, %s43
    %s46 = sphi 0, %s45
    %s60 = sphi 0, %s46
    %s64 = sphi 0, %s64
    %s66 = sphi 0, %s64
    %s67 = sphi 0, %s66
    %s81 = sphi 0, %s67
    %s87 = sphi 0, %s89
    %s90 = sphi 0, %s87
    %s91 = sphi 0, %s90
    %s107 = sphi 0, %s91
  $region4: #{decoder_block_forward.5} parent=0 // loop_header_branch
    %12 = sbr.rel (%p10) target = $region8
  $region5: #{decoder_block_forward.5} parent=0 // loop_body
    %s14 = ssub.s32 %s9, 1
    %s15 = ssub.s32 %s9, 2
    %s16 = sadd.s32 %s9, 1
    %s17 = ssub.s32 %s9, %s16
    %p18 = scmp.eq.s32.totalorder %s17, 0
    %s20 = sadd.s32 %s19, 1
    %s21 = scalar_select %p18, %s19, %s20
    %p24 = pneg %p18
    %p25 = scmp.eq.s32.totalorder %s9, 1
    %p26 = por %p24, %p25
    %p27 = scmp.ne.s32.totalorder %s19, %s22
    %p28 = scmp.eq.s32.totalorder %s9, 0
    %p29 = por %p27, %p28
    %p30 = scmp.ne.s32.totalorder %s19, %s22
    %p31 = scmp.eq.s32.totalorder %s14, 1
    %p32 = por %p30, %p31
    %p33 = scmp.ne.s32.totalorder %s22, %s23
    %p34 = scmp.eq.s32.totalorder %s14, 0
    %p35 = por %p33, %p34
    %p36 = scmp.ne.s32.totalorder %s22, %s23
    %p37 = scmp.eq.s32.totalorder %s15, 1
    %p38 = por %p36, %p37
    %p40 = scmp.ne.s32.totalorder %s23, %s39
    %p41 = scmp.eq.s32.totalorder %s15, 0
    %p42 = por %p40, %p41
    %s44 = sadd.s32 %s43, 1
    %p47 = scmp.eq.s32.totalorder %s9, 1
    %p48 = scmp.ne.s32.totalorder %s43, %s45
    %p49 = scmp.eq.s32.totalorder %s9, 0
    %p50 = por %p48, %p49
    %p51 = scmp.ne.s32.totalorder %s43, %s45
    %p52 = scmp.eq.s32.totalorder %s14, 1
    %p53 = por %p51, %p52
    %p54 = scmp.ne.s32.totalorder %s45, %s46
    %p55 = scmp.eq.s32.totalorder %s14, 0
    %p56 = por %p54, %p55
    %p57 = scmp.ne.s32.totalorder %s45, %s46
    %p58 = scmp.eq.s32.totalorder %s15, 1
    %p59 = por %p57, %p58
    %p61 = scmp.ne.s32.totalorder %s46, %s60
    %p62 = scmp.eq.s32.totalorder %s15, 0
    %p63 = por %p61, %p62
    %s65 = sadd.s32 %s64, 1
    %p68 = scmp.eq.s32.totalorder %s9, 1
    %p69 = scmp.ne.s32.totalorder %s64, %s66
    %p70 = scmp.eq.s32.totalorder %s9, 0
    %p71 = por %p69, %p70
    %p72 = scmp.ne.s32.totalorder %s64, %s66
    %p73 = scmp.eq.s32.totalorder %s14, 1
    %p74 = por %p72, %p73
    %p75 = scmp.ne.s32.totalorder %s66, %s67
    %p76 = scmp.eq.s32.totalorder %s14, 0
    %p77 = por %p75, %p76
    %p78 = scmp.ne.s32.totalorder %s66, %s67
    %p79 = scmp.eq.s32.totalorder %s15, 1
    %p80 = por %p78, %p79
    %p82 = scmp.ne.s32.totalorder %s67, %s81
    %p83 = scmp.eq.s32.totalorder %s15, 0
    %p84 = por %p82, %p83
    %s85 = ssub.s32 %s9, %s16
    %p86 = scmp.eq.s32.totalorder %s85, 0
    %s88 = sadd.s32 %s87, 1
    %s89 = scalar_select %p86, %s87, %s88
    %p92 = pneg %p86
    %p93 = scmp.eq.s32.totalorder %s9, 1
    %p94 = por %p92, %p93
    %p95 = scmp.ne.s32.totalorder %s87, %s90
    %p96 = scmp.eq.s32.totalorder %s9, 0
    %p97 = por %p95, %p96
    %p98 = scmp.ne.s32.totalorder %s87, %s90
    %p99 = scmp.eq.s32.totalorder %s14, 1
    %p100 = por %p98, %p99
    %p101 = scmp.ne.s32.totalorder %s90, %s91
    %p102 = scmp.eq.s32.totalorder %s14, 0
    %p103 = por %p101, %p102
    %p104 = scmp.ne.s32.totalorder %s90, %s91
    %p105 = scmp.eq.s32.totalorder %s15, 1
    %p106 = por %p104, %p105
    %p108 = scmp.ne.s32.totalorder %s91, %s107
    %p109 = scmp.eq.s32.totalorder %s15, 0
    %p110 = por %p108, %p109
    %p111 = scmp.le.s32.totalorder 1, %s9
    %p112 = scmp.lt.s32.totalorder %s9, 3
    %p113 = pnand %p111, %p112
    %p114 = pneg %p113
    // Predicated region
    $region9: #{decoder_block_forward.5} parent=5 // pred_check
      _
    $region10: #{decoder_block_forward.5} parent=5 // pred_check_branch
      %116 = sbr.rel (%p113) target = $region12
    $region11: #{decoder_block_forward.5} parent=5 // pred_region
      %s117 = ssub.s32 %s9, 1
      // Predicated region
      $region13: #{decoder_block_forward.5} parent=11 // pred_check
        %p118 = pneg %p56
      $region14: #{decoder_block_forward.5} parent=11 // pred_check_branch
        %120 = sbr.rel (%p118) target = $region16
      $region15: #{decoder_block_forward.5} parent=11 // pred_region
        _
      $region16: #{decoder_block_forward.5} parent=11 // pred_fallthru
        _
      // Predicated region
      $region17: #{decoder_block_forward.5} parent=11 // pred_check
        %p121 = pneg %p77
      $region18: #{decoder_block_forward.5} parent=11 // pred_check_branch
        %123 = sbr.rel (%p121) target = $region20
      $region19: #{decoder_block_forward.5} parent=11 // pred_region
        _
      $region20: #{decoder_block_forward.5} parent=11 // pred_fallthru
        _
    $region12: #{decoder_block_forward.5} parent=5 // pred_fallthru
      _
    %p124 = scmp.lt.s32.totalorder %s9, 2
    // Predicated region
    $region21: #{decoder_block_forward.5} parent=5 // pred_check
      %p125 = pneg %p124
    $region22: #{decoder_block_forward.5} parent=5 // pred_check_branch
      %127 = sbr.rel (%p125) target = $region24
    $region23: #{decoder_block_forward.5} parent=5 // pred_region
      // Predicated region
      $region25: #{decoder_block_forward.5} parent=23 // pred_check
        %p128 = pneg %p29
      $region26: #{decoder_block_forward.5} parent=23 // pred_check_branch
        %130 = sbr.rel (%p128) target = $region28
      $region27: #{decoder_block_forward.5} parent=23 // pred_region
        %p131 = scmp.lt.s32.totalorder %s9, 1
        %s132 = scalar_select %p131, %s9, 1
        %s133 = smul.addr %s132, 2
        %s134 = smul.addr %s133, 8
        %s135 = scalar_lea.vmem %s0, %s134
      $region28: #{decoder_block_forward.5} parent=23 // pred_fallthru
        _
    $region24: #{decoder_block_forward.5} parent=5 // pred_fallthru
      _
    %p136 = scmp.le.s32.totalorder 1, %s9
    %p137 = scmp.lt.s32.totalorder %s9, 3
    %p138 = pnand %p136, %p137
    %p139 = pneg %p138
    // Predicated region
    $region29: #{decoder_block_forward.5} parent=5 // pred_check
      _
    $region30: #{decoder_block_forward.5} parent=5 // pred_check_branch
      %141 = sbr.rel (%p138) target = $region32
    $region31: #{decoder_block_forward.5} parent=5 // pred_region
      %s142 = ssub.s32 %s9, 1
      %p143 = scmp.lt.s32.totalorder %s14, 1
      %s144 = scalar_select %p143, %s14, 1
      %s145 = smul.addr %s144, 2
      %s146 = smul.addr %s145, 8
      %s147 = scalar_lea.vmem %s0, %s146
      %p148 = pneg %p35
      %p149 = pneg %p32
      %p150 = pneg %p56
      %p151 = pneg %p53
      %p152 = pneg %p77
      %p153 = pneg %p74
      %p154 = pneg %p103
      %p155 = pneg %p100
      %p156 = scmp.lt.s32.totalorder %s14, 1
      %s157 = scalar_select %p156, %s14, 1
      %s158 = smul.addr %s157, 2
      %s159 = smul.addr %s158, 8
      %s160 = scalar_lea.vmem %s3, %s159
      %p161 = scmp.lt.s32.totalorder %s14, 1
      %s162 = scalar_select %p161, %s14, 1
      %s163 = smul.addr %s162, 2
      %s164 = smul.addr %s163, 8
      %s165 = scalar_lea.vmem %s0, %s164
      %p166 = scmp.lt.s32.totalorder %s14, 1
      %s167 = scalar_select %p166, %s14, 1
      %s168 = smul.addr %s167, 2
      %s169 = smul.addr %s168, 8
      %s170 = scalar_lea.vmem %s3, %s169
      %v171 = vld [vmem:[%s165] sm:$0xff]
      %v172 = vld [vmem:[%s165 + $0x8] sm:$0xff]
      %v173 = vld [vmem:[%s1] sm:$0xff]
      %175 = vset.pattern.permute.xlu0 0
      %176 = vperm.xlu0 %175, %v173
      %v177 = vpop.permute.xlu0 %176
      %v179 = vmul.f32 %v171, %v177
      %v180 = vmul.f32 %v172, %v177
      %v181 = vld [vmem:[%s2] sm:$0xff]
      %183 = vset.pattern.permute.xlu0 0
      %184 = vperm.xlu0 %183, %v181
      %v185 = vpop.permute.xlu0 %184
      %v187 = vadd.f32 %v179, %v185
      %v188 = vadd.f32 %v180, %v185
      %v189 = vmax.f32 %v187, 0.0
      %v190 = vmax.f32 %v188, 0.0
      %191 = vst [vmem:[%s170] sm:$0xff] %v189
      %192 = vst [vmem:[%s170 + $0x8] sm:$0xff] %v190
      %p193 = scmp.lt.s32.totalorder %s14, 1
      %s194 = scalar_select %p193, %s14, 1
      %s195 = smul.addr %s194, 2
      %s196 = smul.addr %s195, 8
      %s197 = scalar_lea.vmem %s3, %s196
      // Predicated region
      $region33: #{decoder_block_forward.5} parent=31 // pred_check
        %p198 = pneg %p100
      $region34: #{decoder_block_forward.5} parent=31 // pred_check_branch
        %200 = sbr.rel (%p198) target = $region36
      $region35: #{decoder_block_forward.5} parent=31 // pred_region
        _
      $region36: #{decoder_block_forward.5} parent=31 // pred_fallthru
        _
    $region32: #{decoder_block_forward.5} parent=5 // pred_fallthru
      _
    %p201 = scmp.le.s32.totalorder 2, %s9
    // Predicated region
    $region37: #{decoder_block_forward.5} parent=5 // pred_check
      %p202 = pneg %p201
    $region38: #{decoder_block_forward.5} parent=5 // pred_check_branch
      %204 = sbr.rel (%p202) target = $region40
    $region39: #{decoder_block_forward.5} parent=5 // pred_region
      %s205 = ssub.s32 %s9, 2
      // Predicated region
      $region41: #{decoder_block_forward.5} parent=39 // pred_check
        %p206 = pneg %p106
      $region42: #{decoder_block_forward.5} parent=39 // pred_check_branch
        %208 = sbr.rel (%p206) target = $region44
      $region43: #{decoder_block_forward.5} parent=39 // pred_region
        %p209 = scmp.lt.s32.totalorder %s15, 1
        %s210 = scalar_select %p209, %s15, 1
        %s211 = smul.addr %s210, 2
        %s212 = smul.addr %s211, 8
        %s213 = scalar_lea.vmem %s3, %s212
      $region44: #{decoder_block_forward.5} parent=39 // pred_fallthru
        _
    $region40: #{decoder_block_forward.5} parent=5 // pred_fallthru
      _
  $region6: #{decoder_block_forward.5} parent=0 // loop_footer
    %s13 = sadd.s32 1, %s9
  $region7: #{decoder_block_forward.5} parent=0 // loop_footer_branch
    %8 = sbr.rel target = $region3
  $region8: #{decoder_block_forward.5} parent=0 // loop_exit
    _

// kernel: decoder_block_forward.4
$region0: #{decoder_block_forward.4}
  #allocation0 [shape = 'u32[]', space=smem, size = 0x4, offset = 0x4, fixed_abs, tag = 'smem constant byte address 0x4 - core index']
  #allocation1 [shape = 'u32[144,128]{1,0:T(1,128)}', space=vmem, size = 0x12000, scoped, tag = 'internal scratch']
  %s0 = inlined_call_operand.vmem [shape: f32[2,8,256], index: 0, kind: input, shape index: {}]
  %s1 = inlined_call_operand.vmem [shape: f32[8,1], index: 1, kind: input, shape index: {}]
  %s2 = inlined_call_operand.vmem [shape: f32[8,1], index: 2, kind: input, shape index: {}]
  %s3 = inlined_call_operand.vmem [shape: f32[3,256], index: 3, kind: input, shape index: {}]
  %s4 = inlined_call_operand.vmem [shape: f32[8,72], index: 4, kind: input, shape index: {}]
  %s5 = inlined_call_operand.vmem [shape: f32[2,8,256], index: 5, kind: output, shape index: {0}]
  %s6 = inlined_call_operand.vmem [shape: f32[2,8,1], index: 6, kind: output, shape index: {1}]
  %s7 = inlined_call_operand.vmem [shape: f32[2,8,1], index: 7, kind: output, shape index: {2}]
  %8 = xla_tuple %s5, %s6, %s7
  %s9 = sld [smem:[#allocation0]]
  $region69: #{decoder_block_forward.4} parent=0
    _
  %s11 = ssub.s32 1, %s9
  %s12 = scalar_select 0, %s11, %s9
  loop: start=0, step=1, limit=4
  $region2: #{decoder_block_forward.4} parent=0 // loop_pre_header
    _
  $region3: #{decoder_block_forward.4} parent=0 // loop_header
    %s14 = sphi 0, %s18
    %p15 = scmp.ge.s32.totalorder %s14, 4
    %s24 = sphi 0, %s26
    %s27 = sphi 0, %s24
    %s28 = sphi 0, %s27
    %s44 = sphi 0, %s28
    %s48 = sphi 0, %s48
    %s50 = sphi 0, %s48
    %s51 = sphi 0, %s50
    %s65 = sphi 0, %s51
    %s69 = sphi 0, %s69
    %s71 = sphi 0, %s69
    %s72 = sphi 0, %s71
    %s86 = sphi 0, %s72
    %s90 = sphi 0, %s90
    %s92 = sphi 0, %s90
    %s93 = sphi 0, %s92
    %s107 = sphi 0, %s93
    %s111 = sphi 0, %s111
    %s113 = sphi 0, %s111
    %s114 = sphi 0, %s113
    %s128 = sphi 0, %s114
    %s134 = sphi 0, %s136
    %s137 = sphi 0, %s134
    %s138 = sphi 0, %s137
    %s154 = sphi 0, %s138
    %s160 = sphi 0, %s162
    %s163 = sphi 0, %s160
    %s164 = sphi 0, %s163
    %s180 = sphi 0, %s164
    %s186 = sphi 0, %s188
    %s189 = sphi 0, %s186
    %s190 = sphi 0, %s189
    %s206 = sphi 0, %s190
  $region4: #{decoder_block_forward.4} parent=0 // loop_header_branch
    %17 = sbr.rel (%p15) target = $region8
  $region5: #{decoder_block_forward.4} parent=0 // loop_body
    %s19 = ssub.s32 %s14, 1
    %s20 = ssub.s32 %s14, 2
    %s21 = sadd.s32 %s14, 1
    %s22 = ssub.s32 %s14, %s21
    %p23 = scmp.eq.s32.totalorder %s22, 0
    %s25 = sadd.s32 %s24, 1
    %s26 = scalar_select %p23, %s24, %s25
    %p29 = pneg %p23
    %p30 = scmp.eq.s32.totalorder %s14, 1
    %p31 = por %p29, %p30
    %p32 = scmp.ne.s32.totalorder %s24, %s27
    %p33 = scmp.eq.s32.totalorder %s14, 0
    %p34 = por %p32, %p33
    %p35 = scmp.ne.s32.totalorder %s24, %s27
    %p36 = scmp.eq.s32.totalorder %s19, 1
    %p37 = por %p35, %p36
    %p38 = scmp.ne.s32.totalorder %s27, %s28
    %p39 = scmp.eq.s32.totalorder %s19, 0
    %p40 = por %p38, %p39
    %p41 = scmp.ne.s32.totalorder %s27, %s28
    %p42 = scmp.eq.s32.totalorder %s20, 1
    %p43 = por %p41, %p42
    %p45 = scmp.ne.s32.totalorder %s28, %s44
    %p46 = scmp.eq.s32.totalorder %s20, 0
    %p47 = por %p45, %p46
    %s49 = sadd.s32 %s48, 1
    %p52 = scmp.eq.s32.totalorder %s14, 1
    %p53 = scmp.ne.s32.totalorder %s48, %s50
    %p54 = scmp.eq.s32.totalorder %s14, 0
    %p55 = por %p53, %p54
    %p56 = scmp.ne.s32.totalorder %s48, %s50
    %p57 = scmp.eq.s32.totalorder %s19, 1
    %p58 = por %p56, %p57
    %p59 = scmp.ne.s32.totalorder %s50, %s51
    %p60 = scmp.eq.s32.totalorder %s19, 0
    %p61 = por %p59, %p60
    %p62 = scmp.ne.s32.totalorder %s50, %s51
    %p63 = scmp.eq.s32.totalorder %s20, 1
    %p64 = por %p62, %p63
    %p66 = scmp.ne.s32.totalorder %s51, %s65
    %p67 = scmp.eq.s32.totalorder %s20, 0
    %p68 = por %p66, %p67
    %s70 = sadd.s32 %s69, 1
    %p73 = scmp.eq.s32.totalorder %s14, 1
    %p74 = scmp.ne.s32.totalorder %s69, %s71
    %p75 = scmp.eq.s32.totalorder %s14, 0
    %p76 = por %p74, %p75
    %p77 = scmp.ne.s32.totalorder %s69, %s71
    %p78 = scmp.eq.s32.totalorder %s19, 1
    %p79 = por %p77, %p78
    %p80 = scmp.ne.s32.totalorder %s71, %s72
    %p81 = scmp.eq.s32.totalorder %s19, 0
    %p82 = por %p80, %p81
    %p83 = scmp.ne.s32.totalorder %s71, %s72
    %p84 = scmp.eq.s32.totalorder %s20, 1
    %p85 = por %p83, %p84
    %p87 = scmp.ne.s32.totalorder %s72, %s86
    %p88 = scmp.eq.s32.totalorder %s20, 0
    %p89 = por %p87, %p88
    %s91 = sadd.s32 %s90, 1
    %p94 = scmp.eq.s32.totalorder %s14, 1
    %p95 = scmp.ne.s32.totalorder %s90, %s92
    %p96 = scmp.eq.s32.totalorder %s14, 0
    %p97 = por %p95, %p96
    %p98 = scmp.ne.s32.totalorder %s90, %s92
    %p99 = scmp.eq.s32.totalorder %s19, 1
    %p100 = por %p98, %p99
    %p101 = scmp.ne.s32.totalorder %s92, %s93
    %p102 = scmp.eq.s32.totalorder %s19, 0
    %p103 = por %p101, %p102
    %p104 = scmp.ne.s32.totalorder %s92, %s93
    %p105 = scmp.eq.s32.totalorder %s20, 1
    %p106 = por %p104, %p105
    %p108 = scmp.ne.s32.totalorder %s93, %s107
    %p109 = scmp.eq.s32.totalorder %s20, 0
    %p110 = por %p108, %p109
    %s112 = sadd.s32 %s111, 1
    %p115 = scmp.eq.s32.totalorder %s14, 1
    %p116 = scmp.ne.s32.totalorder %s111, %s113
    %p117 = scmp.eq.s32.totalorder %s14, 0
    %p118 = por %p116, %p117
    %p119 = scmp.ne.s32.totalorder %s111, %s113
    %p120 = scmp.eq.s32.totalorder %s19, 1
    %p121 = por %p119, %p120
    %p122 = scmp.ne.s32.totalorder %s113, %s114
    %p123 = scmp.eq.s32.totalorder %s19, 0
    %p124 = por %p122, %p123
    %p125 = scmp.ne.s32.totalorder %s113, %s114
    %p126 = scmp.eq.s32.totalorder %s20, 1
    %p127 = por %p125, %p126
    %p129 = scmp.ne.s32.totalorder %s114, %s128
    %p130 = scmp.eq.s32.totalorder %s20, 0
    %p131 = por %p129, %p130
    %s132 = ssub.s32 %s14, %s21
    %p133 = scmp.eq.s32.totalorder %s132, 0
    %s135 = sadd.s32 %s134, 1
    %s136 = scalar_select %p133, %s134, %s135
    %p139 = pneg %p133
    %p140 = scmp.eq.s32.totalorder %s14, 1
    %p141 = por %p139, %p140
    %p142 = scmp.ne.s32.totalorder %s134, %s137
    %p143 = scmp.eq.s32.totalorder %s14, 0
    %p144 = por %p142, %p143
    %p145 = scmp.ne.s32.totalorder %s134, %s137
    %p146 = scmp.eq.s32.totalorder %s19, 1
    %p147 = por %p145, %p146
    %p148 = scmp.ne.s32.totalorder %s137, %s138
    %p149 = scmp.eq.s32.totalorder %s19, 0
    %p150 = por %p148, %p149
    %p151 = scmp.ne.s32.totalorder %s137, %s138
    %p152 = scmp.eq.s32.totalorder %s20, 1
    %p153 = por %p151, %p152
    %p155 = scmp.ne.s32.totalorder %s138, %s154
    %p156 = scmp.eq.s32.totalorder %s20, 0
    %p157 = por %p155, %p156
    %s158 = ssub.s32 %s14, %s21
    %p159 = scmp.eq.s32.totalorder %s158, 0
    %s161 = sadd.s32 %s160, 1
    %s162 = scalar_select %p159, %s160, %s161
    %p165 = pneg %p159
    %p166 = scmp.eq.s32.totalorder %s14, 1
    %p167 = por %p165, %p166
    %p168 = scmp.ne.s32.totalorder %s160, %s163
    %p169 = scmp.eq.s32.totalorder %s14, 0
    %p170 = por %p168, %p169
    %p171 = scmp.ne.s32.totalorder %s160, %s163
    %p172 = scmp.eq.s32.totalorder %s19, 1
    %p173 = por %p171, %p172
    %p174 = scmp.ne.s32.totalorder %s163, %s164
    %p175 = scmp.eq.s32.totalorder %s19, 0
    %p176 = por %p174, %p175
    %p177 = scmp.ne.s32.totalorder %s163, %s164
    %p178 = scmp.eq.s32.totalorder %s20, 1
    %p179 = por %p177, %p178
    %p181 = scmp.ne.s32.totalorder %s164, %s180
    %p182 = scmp.eq.s32.totalorder %s20, 0
    %p183 = por %p181, %p182
    %s184 = ssub.s32 %s14, %s21
    %p185 = scmp.eq.s32.totalorder %s184, 0
    %s187 = sadd.s32 %s186, 1
    %s188 = scalar_select %p185, %s186, %s187
    %p191 = pneg %p185
    %p192 = scmp.eq.s32.totalorder %s14, 1
    %p193 = por %p191, %p192
    %p194 = scmp.ne.s32.totalorder %s186, %s189
    %p195 = scmp.eq.s32.totalorder %s14, 0
    %p196 = por %p194, %p195
    %p197 = scmp.ne.s32.totalorder %s186, %s189
    %p198 = scmp.eq.s32.totalorder %s19, 1
    %p199 = por %p197, %p198
    %p200 = scmp.ne.s32.totalorder %s189, %s190
    %p201 = scmp.eq.s32.totalorder %s19, 0
    %p202 = por %p200, %p201
    %p203 = scmp.ne.s32.totalorder %s189, %s190
    %p204 = scmp.eq.s32.totalorder %s20, 1
    %p205 = por %p203, %p204
    %p207 = scmp.ne.s32.totalorder %s190, %s206
    %p208 = scmp.eq.s32.totalorder %s20, 0
    %p209 = por %p207, %p208
    %p210 = scmp.le.s32.totalorder 1, %s14
    %p211 = scmp.lt.s32.totalorder %s14, 3
    %p212 = pnand %p210, %p211
    %p213 = pneg %p212
    // Predicated region
    $region9: #{decoder_block_forward.4} parent=5 // pred_check
      _
    $region10: #{decoder_block_forward.4} parent=5 // pred_check_branch
      %215 = sbr.rel (%p212) target = $region12
    $region11: #{decoder_block_forward.4} parent=5 // pred_region
      %s216 = ssub.s32 %s14, 1
      // Predicated region
      $region13: #{decoder_block_forward.4} parent=11 // pred_check
        %p217 = pneg %p61
      $region14: #{decoder_block_forward.4} parent=11 // pred_check_branch
        %219 = sbr.rel (%p217) target = $region16
      $region15: #{decoder_block_forward.4} parent=11 // pred_region
        _
      $region16: #{decoder_block_forward.4} parent=11 // pred_fallthru
        _
      // Predicated region
      $region17: #{decoder_block_forward.4} parent=11 // pred_check
        %p220 = pneg %p82
      $region18: #{decoder_block_forward.4} parent=11 // pred_check_branch
        %222 = sbr.rel (%p220) target = $region20
      $region19: #{decoder_block_forward.4} parent=11 // pred_region
        _
      $region20: #{decoder_block_forward.4} parent=11 // pred_fallthru
        _
      // Predicated region
      $region21: #{decoder_block_forward.4} parent=11 // pred_check
        %p223 = pneg %p103
      $region22: #{decoder_block_forward.4} parent=11 // pred_check_branch
        %225 = sbr.rel (%p223) target = $region24
      $region23: #{decoder_block_forward.4} parent=11 // pred_region
        _
      $region24: #{decoder_block_forward.4} parent=11 // pred_fallthru
        _
      // Predicated region
      $region25: #{decoder_block_forward.4} parent=11 // pred_check
        %p226 = pneg %p124
      $region26: #{decoder_block_forward.4} parent=11 // pred_check_branch
        %228 = sbr.rel (%p226) target = $region28
      $region27: #{decoder_block_forward.4} parent=11 // pred_region
        _
      $region28: #{decoder_block_forward.4} parent=11 // pred_fallthru
        _
    $region12: #{decoder_block_forward.4} parent=5 // pred_fallthru
      _
    %p229 = scmp.lt.s32.totalorder %s14, 2
    // Predicated region
    $region29: #{decoder_block_forward.4} parent=5 // pred_check
      %p230 = pneg %p229
    $region30: #{decoder_block_forward.4} parent=5 // pred_check_branch
      %232 = sbr.rel (%p230) target = $region32
    $region31: #{decoder_block_forward.4} parent=5 // pred_region
      // Predicated region
      $region33: #{decoder_block_forward.4} parent=31 // pred_check
        %p233 = pneg %p34
      $region34: #{decoder_block_forward.4} parent=31 // pred_check_branch
        %235 = sbr.rel (%p233) target = $region36
      $region35: #{decoder_block_forward.4} parent=31 // pred_region
        %p236 = scmp.lt.s32.totalorder %s14, 1
        %s237 = scalar_select %p236, %s14, 1
        %s238 = smul.addr %s237, 2
        %s239 = smul.addr %s238, 8
        %s240 = scalar_lea.vmem %s0, %s239
      $region36: #{decoder_block_forward.4} parent=31 // pred_fallthru
        _
    $region32: #{decoder_block_forward.4} parent=5 // pred_fallthru
      _
    %p241 = scmp.le.s32.totalorder 1, %s14
    %p242 = scmp.lt.s32.totalorder %s14, 3
    %p243 = pnand %p241, %p242
    %p244 = pneg %p243
    // Predicated region
    $region37: #{decoder_block_forward.4} parent=5 // pred_check
      _
    $region38: #{decoder_block_forward.4} parent=5 // pred_check_branch
      %246 = sbr.rel (%p243) target = $region40
    $region39: #{decoder_block_forward.4} parent=5 // pred_region
      %s247 = ssub.s32 %s14, 1
      %p248 = scmp.lt.s32.totalorder %s19, 1
      %s249 = scalar_select %p248, %s19, 1
      %s250 = smul.addr %s249, 2
      %s251 = smul.addr %s250, 8
      %s252 = scalar_lea.vmem %s0, %s251
      %p253 = pneg %p40
      %p254 = pneg %p37
      %p255 = pneg %p61
      %p256 = pneg %p58
      %p257 = pneg %p82
      %p258 = pneg %p79
      %p259 = pneg %p103
      %p260 = pneg %p100
      %p261 = pneg %p124
      %p262 = pneg %p121
      %p263 = pneg %p150
      %p264 = pneg %p147
      %p265 = scmp.lt.s32.totalorder %s19, 1
      %s266 = scalar_select %p265, %s19, 1
      %s267 = smul.addr %s266, 2
      %s268 = smul.addr %s267, 8
      %s269 = scalar_lea.vmem %s5, %s268
      %p270 = pneg %p176
      %p271 = pneg %p173
      %p272 = scmp.lt.s32.totalorder %s19, 1
      %s273 = scalar_select %p272, %s19, 1
      %s274 = smul.addr %s273, 8
      %s275 = scalar_lea.vmem %s6, %s274
      %p276 = pneg %p202
      %p277 = pneg %p199
      %p278 = scmp.lt.s32.totalorder %s19, 1
      %s279 = scalar_select %p278, %s19, 1
      %s280 = smul.addr %s279, 8
      %s281 = scalar_lea.vmem %s7, %s280
      %p282 = scmp.lt.s32.totalorder %s19, 1
      %s283 = scalar_select %p282, %s19, 1
      %s284 = smul.addr %s283, 2
      %s285 = smul.addr %s284, 8
      %s286 = scalar_lea.vmem %s0, %s285
      %p287 = scmp.lt.s32.totalorder %s19, 1
      %s288 = scalar_select %p287, %s19, 1
      %s289 = smul.addr %s288, 2
      %s290 = smul.addr %s289, 8
      %s291 = scalar_lea.vmem %s5, %s290
      %p292 = scmp.lt.s32.totalorder %s19, 1
      %s293 = scalar_select %p292, %s19, 1
      %s294 = smul.addr %s293, 8
      %s295 = scalar_lea.vmem %s6, %s294
      %p296 = scmp.lt.s32.totalorder %s19, 1
      %s297 = scalar_select %p296, %s19, 1
      %s298 = smul.addr %s297, 8
      %s299 = scalar_lea.vmem %s7, %s298
      %v300 = vld [vmem:[%s286] sm:$0xff]
      %v301 = vld [vmem:[%s286 + $0x8] sm:$0xff]
      %v302 = vld [vmem:[%s1] sm:$0xff]
      %304 = vset.pattern.permute.xlu0 0
      %305 = vperm.xlu0 %304, %v302
      %v306 = vpop.permute.xlu0 %305
      %v308 = vmul.f32 %v300, %v306
      %v309 = vmul.f32 %v301, %v306
      %v310 = vld [vmem:[%s2] sm:$0xff]
      %312 = vset.pattern.permute.xlu0 0
      %313 = vperm.xlu0 %312, %v310
      %v314 = vpop.permute.xlu0 %313
      %v316 = vadd.f32 %v308, %v314
      %v317 = vadd.f32 %v309, %v314
      %v318 = vmax.f32 %v316, 0.0
      %v319 = vmax.f32 %v317, 0.0
      %v320 = vld [vmem:[%s4] sm:$0xff]
      %v321 = vld [vmem:[%s3] sm:$0x77]
      %324 = vrot.lane.b32.xlu0 %v318, 17
      %v325 = vpop.permute.xlu0 %324
      %326 = vrot.lane.b32.xlu0 %v319, 17
      %v327 = vpop.permute.xlu0 %326
      %vm328 = vcmask 138240
      %v329 = vsel %vm328, %v325, %v327
      %v333 = vsel %vm328, 0.0, %v325
      %v334 = vsel %vm328, %v327, 0.0
      %v336 = vlaneseq
      %v337 = vshrl.u32 %v336, 7
      %v338 = vsub.s32 0, %v337
      %v339 = vrot.slane %v321, %v338
      %v340 = vlaneseq
      %v341 = vshrl.u32 %v340, 7
      %v342 = vsub.s32 4, %v341
      %v343 = vrot.slane %v321, %v342
      %v346 = vlaneseq
      %v347 = vshrl.u32 %v346, 7
      %v348 = vsub.s32 0, %v347
      %v349 = vrot.slane %v339, %v348
      %v350 = vlaneseq
      %v351 = vshrl.u32 %v350, 7
      %v352 = vsub.s32 0, %v351
      %v353 = vrot.slane %v343, %v352
      %v354 = vmul.f32 %v333, %v349
      %v355 = vmul.f32 %v329, %v353
      %v356 = vlaneseq
      %v357 = vshrl.u32 %v356, 7
      %v358 = vsub.s32 2, %v357
      %v359 = vrot.slane %v321, %v358
      %v360 = vlaneseq
      %v361 = vshrl.u32 %v360, 7
      %v362 = vsub.s32 6, %v361
      %v363 = vrot.slane %v321, %v362
      %v366 = vlaneseq
      %v367 = vshrl.u32 %v366, 7
      %v368 = vsub.s32 2, %v367
      %v369 = vrot.slane %v359, %v368
      %v370 = vlaneseq
      %v371 = vshrl.u32 %v370, 7
      %v372 = vsub.s32 2, %v371
      %v373 = vrot.slane %v363, %v372
      %376 = vrot.lane.b32.xlu0 %v369, 2
      %v377 = vpop.permute.xlu0 %376
      %378 = vrot.lane.b32.xlu0 %v373, 2
      %v379 = vpop.permute.xlu0 %378
      %vm380 = vcmask 15360
      %v381 = vsel %vm380, %v377, %v379
      %v385 = vmul.f32 %v333, %v377
      %v386 = vmul.f32 %v329, %v381
      %v387 = vmul.f32 %v334, %v379
      %390 = vrot.lane.b32.xlu0 %v349, 16
      %v391 = vpop.permute.xlu0 %390
      %392 = vrot.lane.b32.xlu0 %v353, 16
      %v393 = vpop.permute.xlu0 %392
      %vm394 = vcmask 130048
      %v395 = vsel %vm394, %v391, %v393
      %v399 = vmul.f32 %v333, %v391
      %v400 = vmul.f32 %v329, %v395
      %v401 = vmul.f32 %v334, %v393
      %402 = vrot.lane.b32.xlu0 %v369, 18
      %v403 = vpop.permute.xlu0 %402
      %404 = vrot.lane.b32.xlu0 %v373, 18
      %v405 = vpop.permute.xlu0 %404
      %vm406 = vcmask 146432
      %v407 = vsel %vm406, %v403, %v405
      %v411 = vmul.f32 %v333, %v403
      %v412 = vmul.f32 %v329, %v407
      %v413 = vmul.f32 %v334, %v405
      %414 = vrot.lane.b32.xlu0 %v349, 32
      %v415 = vpop.permute.xlu0 %414
      %416 = vrot.lane.b32.xlu0 %v353, 32
      %v417 = vpop.permute.xlu0 %416
      %vm418 = vcmask 261120
      %v419 = vsel %vm418, %v415, %v417
      %v423 = vmul.f32 %v333, %v415
      %v424 = vmul.f32 %v329, %v419
      %v425 = vmul.f32 %v334, %v417
      %426 = vrot.lane.b32.xlu0 %v369, 34
      %v427 = vpop.permute.xlu0 %426
      %428 = vrot.lane.b32.xlu0 %v373, 34
      %v429 = vpop.permute.xlu0 %428
      %vm430 = vcmask 277504
      %v431 = vsel %vm430, %v427, %v429
      %v435 = vmul.f32 %v333, %v427
      %v436 = vmul.f32 %v329, %v431
      %v437 = vmul.f32 %v334, %v429
      %440 = vrot.lane.b32.xlu0 %v333, 127
      %v441 = vpop.permute.xlu0 %440
      %442 = vrot.lane.b32.xlu0 %v329, 127
      %v443 = vpop.permute.xlu0 %442
      %444 = vrot.lane.b32.xlu0 %v334, 127
      %v445 = vpop.permute.xlu0 %444
      %vm446 = vcmask 1039360
      %v447 = vsel %vm446, %v441, %v443
      %v448 = vsel %vm446, %v443, %v445
      %454 = vrot.lane.b32.xlu0 %v385, 126
      %v455 = vpop.permute.xlu0 %454
      %456 = vrot.lane.b32.xlu0 %v386, 126
      %v457 = vpop.permute.xlu0 %456
      %458 = vrot.lane.b32.xlu0 %v387, 126
      %v459 = vpop.permute.xlu0 %458
      %vm460 = vcmask 1031168
      %v461 = vsel %vm460, %v455, %v457
      %v462 = vsel %vm460, %v457, %v459
      %468 = vrot.lane.b32.xlu0 %v399, 112
      %v469 = vpop.permute.xlu0 %468
      %470 = vrot.lane.b32.xlu0 %v400, 112
      %v471 = vpop.permute.xlu0 %470
      %472 = vrot.lane.b32.xlu0 %v401, 112
      %v473 = vpop.permute.xlu0 %472
      %vm474 = vcmask 916480
      %v475 = vsel %vm474, %v469, %v471
      %v476 = vsel %vm474, %v471, %v473
      %479 = vrot.lane.b32.xlu0 %v333, 111
      %v480 = vpop.permute.xlu0 %479
      %481 = vrot.lane.b32.xlu0 %v329, 111
      %v482 = vpop.permute.xlu0 %481
      %483 = vrot.lane.b32.xlu0 %v334, 111
      %v484 = vpop.permute.xlu0 %483
      %vm485 = vcmask 908288
      %v486 = vsel %vm485, %v480, %v482
      %v487 = vsel %vm485, %v482, %v484
      %493 = vrot.lane.b32.xlu0 %v411, 110
      %v494 = vpop.permute.xlu0 %493
      %495 = vrot.lane.b32.xlu0 %v412, 110
      %v496 = vpop.permute.xlu0 %495
      %497 = vrot.lane.b32.xlu0 %v413, 110
      %v498 = vpop.permute.xlu0 %497
      %vm499 = vcmask 900096
      %v500 = vsel %vm499, %v494, %v496
      %v501 = vsel %vm499, %v496, %v498
      %507 = vrot.lane.b32.xlu0 %v423, 96
      %v508 = vpop.permute.xlu0 %507
      %509 = vrot.lane.b32.xlu0 %v424, 96
      %v510 = vpop.permute.xlu0 %509
      %511 = vrot.lane.b32.xlu0 %v425, 96
      %v512 = vpop.permute.xlu0 %511
      %vm513 = vcmask 785408
      %v514 = vsel %vm513, %v508, %v510
      %v515 = vsel %vm513, %v510, %v512
      %518 = vrot.lane.b32.xlu0 %v333, 95
      %v519 = vpop.permute.xlu0 %518
      %520 = vrot.lane.b32.xlu0 %v329, 95
      %v521 = vpop.permute.xlu0 %520
      %522 = vrot.lane.b32.xlu0 %v334, 95
      %v523 = vpop.permute.xlu0 %522
      %vm524 = vcmask 777216
      %v525 = vsel %vm524, %v519, %v521
      %v526 = vsel %vm524, %v521, %v523
      %532 = vrot.lane.b32.xlu0 %v435, 94
      %v533 = vpop.permute.xlu0 %532
      %534 = vrot.lane.b32.xlu0 %v436, 94
      %v535 = vpop.permute.xlu0 %534
      %536 = vrot.lane.b32.xlu0 %v437, 94
      %v537 = vpop.permute.xlu0 %536
      %vm538 = vcmask 769024
      %v539 = vsel %vm538, %v533, %v535
      %v540 = vsel %vm538, %v535, %v537
      %vm543 = vcmask 588800
      %v545 = vsel %vm543, %v320, 0
      %547 = vmatprep.subr.mxu0 %v355
      %548 = vmatpush1.msra.mxu0 %v354
      %549 = vmatprep.subr.mxu0 %v448
      %550 = vmatpush1.msra.mxu0 %v447
      %551 = vmatprep.subr.mxu0 %v462
      %552 = vmatpush1.msra.mxu0 %v461
      %553 = vmatprep.subr.mxu0 %v476
      %554 = vmatpush1.msra.mxu0 %v475
      %555 = vmatprep.subr.mxu0 %v487
      %556 = vmatpush1.msra.mxu0 %v486
      %557 = vmatprep.subr.mxu0 %v501
      %558 = vmatpush1.msra.mxu0 %v500
      %559 = vmatprep.subr.mxu0 %v515
      %560 = vmatpush1.msra.mxu0 %v514
      %561 = vmatprep.subr.mxu0 %v526
      %562 = vmatpush1.msra.mxu0 %v525
      %563 = vmatprep.subr.mxu0 %v540
      %564 = vmatpush1.msra.mxu0 %v539
      %565 = vmatprep.subr.mxu0 0.0
      %566 = vmatpush1.msra.mxu0 0.0
      %567 = vmatprep.subr.mxu0 0.0
      %568 = vmatpush1.msra.mxu0 0.0
      %569 = vmatprep.subr.mxu0 0.0
      %570 = vmatpush1.msra.mxu0 0.0
      %571 = vmatprep.subr.mxu0 0.0
      %572 = vmatpush1.msra.mxu0 0.0
      %573 = vmatprep.subr.mxu0 0.0
      %574 = vmatpush1.msra.mxu0 0.0
      %575 = vmatprep.subr.mxu0 0.0
      %576 = vmatpush1.msra.mxu0 0.0
      %577 = vmatprep.subr.mxu0 0.0
      %578 = vmatpush1.msra.mxu0 0.0
      %579 = vmatprep.subr.mxu0 0.0
      %580 = vmatpush1.msra.mxu0 0.0
      %581 = vmatprep.subr.mxu0 0.0
      %582 = vmatpush1.msra.mxu0 0.0
      %583 = vmatprep.subr.mxu0 0.0
      %584 = vmatpush1.msra.mxu0 0.0
      %585 = vmatprep.subr.mxu0 0.0
      %586 = vmatpush1.msra.mxu0 0.0
      %587 = vmatprep.subr.mxu0 0.0
      %588 = vmatpush1.msra.mxu0 0.0
      %589 = vmatprep.subr.mxu0 0.0
      %590 = vmatpush1.msra.mxu0 0.0
      %591 = vmatprep.subr.mxu0 0.0
      %592 = vmatpush1.msra.mxu0 0.0
      %593 = vmatprep.subr.mxu0 0.0
      %594 = vmatpush1.msra.mxu0 0.0
      %595 = vmatprep.subr.mxu0 0.0
      %596 = vmatpush1.msra.mxu0 0.0
      %597 = vmatprep.subr.mxu0 0.0
      %598 = vmatpush1.msra.mxu0 0.0
      %599 = vmatprep.subr.mxu0 0.0
      %600 = vmatpush1.msra.mxu0 0.0
      %601 = vmatprep.subr.mxu0 0.0
      %602 = vmatpush1.msra.mxu0 0.0
      %603 = vmatprep.subr.mxu0 0.0
      %604 = vmatpush1.msra.mxu0 0.0
      %605 = vmatprep.subr.mxu0 0.0
      %606 = vmatpush1.msra.mxu0 0.0
      %607 = vmatprep.subr.mxu0 0.0
      %608 = vmatpush1.msra.mxu0 0.0
      %609 = vmatprep.subr.mxu0 0.0
      %610 = vmatpush1.msra.mxu0 0.0
      %611 = vmatprep.mubr.f32.mxu0 0.0
      %612 = vmatmul.mubr.f32.gmra.mrb[0].mxu0 %v545
      %v613 = vpop.f32.mrb[0].mxu0
      %v614 = vadd.f32 0.0, %v613
      %v615 = vpop.f32.mrb[0].mxu0
      %v616 = vadd.f32 0.0, %v615
      %617 = vdwg.mxu0
      %618 = vst [vmem:[%s291] sm:$0xff] %v614
      %619 = vst [vmem:[%s291 + $0x8] sm:$0xff] %v616
      %v620 = vadd.f32 %v614, %v616
      %621 = vadd.xlane.f32.xlu0 %v620
      %v622 = vpop.xlane.xlu0 %621
      %vm623 = vcmask 7168
      %624 = vst.msk [vmem:[%s295] sm:$0xff] %vm623, %v622
      %v625 = vmul.f32 %v614, %v614
      %v626 = vmul.f32 %v616, %v616
      %v627 = vadd.f32 %v625, %v626
      %628 = vadd.xlane.f32.xlu0 %v627
      %v629 = vpop.xlane.xlu0 %628
      %630 = vst.msk [vmem:[%s299] sm:$0xff] %vm623, %v629
      %p631 = scmp.lt.s32.totalorder %s19, 1
      %s632 = scalar_select %p631, %s19, 1
      %s633 = smul.addr %s632, 2
      %s634 = smul.addr %s633, 8
      %s635 = scalar_lea.vmem %s5, %s634
      %p636 = scmp.lt.s32.totalorder %s19, 1
      %s637 = scalar_select %p636, %s19, 1
      %s638 = smul.addr %s637, 8
      %s639 = scalar_lea.vmem %s6, %s638
      %p640 = scmp.lt.s32.totalorder %s19, 1
      %s641 = scalar_select %p640, %s19, 1
      %s642 = smul.addr %s641, 8
      %s643 = scalar_lea.vmem %s7, %s642
      // Predicated region
      $region41: #{decoder_block_forward.4} parent=39 // pred_check
        %p644 = pneg %p147
      $region42: #{decoder_block_forward.4} parent=39 // pred_check_branch
        %646 = sbr.rel (%p644) target = $region44
      $region43: #{decoder_block_forward.4} parent=39 // pred_region
        _
      $region44: #{decoder_block_forward.4} parent=39 // pred_fallthru
        _
      // Predicated region
      $region45: #{decoder_block_forward.4} parent=39 // pred_check
        %p647 = pneg %p173
      $region46: #{decoder_block_forward.4} parent=39 // pred_check_branch
        %649 = sbr.rel (%p647) target = $region48
      $region47: #{decoder_block_forward.4} parent=39 // pred_region
        _
      $region48: #{decoder_block_forward.4} parent=39 // pred_fallthru
        _
      // Predicated region
      $region49: #{decoder_block_forward.4} parent=39 // pred_check
        %p650 = pneg %p199
      $region50: #{decoder_block_forward.4} parent=39 // pred_check_branch
        %652 = sbr.rel (%p650) target = $region52
      $region51: #{decoder_block_forward.4} parent=39 // pred_region
        _
      $region52: #{decoder_block_forward.4} parent=39 // pred_fallthru
        _
    $region40: #{decoder_block_forward.4} parent=5 // pred_fallthru
      _
    %p653 = scmp.le.s32.totalorder 2, %s14
    // Predicated region
    $region53: #{decoder_block_forward.4} parent=5 // pred_check
      %p654 = pneg %p653
    $region54: #{decoder_block_forward.4} parent=5 // pred_check_branch
      %656 = sbr.rel (%p654) target = $region56
    $region55: #{decoder_block_forward.4} parent=5 // pred_region
      %s657 = ssub.s32 %s14, 2
      // Predicated region
      $region57: #{decoder_block_forward.4} parent=55 // pred_check
        %p658 = pneg %p153
      $region58: #{decoder_block_forward.4} parent=55 // pred_check_branch
        %660 = sbr.rel (%p658) target = $region60
      $region59: #{decoder_block_forward.4} parent=55 // pred_region
        %p661 = scmp.lt.s32.totalorder %s20, 1
        %s662 = scalar_select %p661, %s20, 1
        %s663 = smul.addr %s662, 2
        %s664 = smul.addr %s663, 8
        %s665 = scalar_lea.vmem %s5, %s664
      $region60: #{decoder_block_forward.4} parent=55 // pred_fallthru
        _
      // Predicated region
      $region61: #{decoder_block_forward.4} parent=55 // pred_check
        %p666 = pneg %p179
      $region62: #{decoder_block_forward.4} parent=55 // pred_check_branch
        %668 = sbr.rel (%p666) target = $region64
      $region63: #{decoder_block_forward.4} parent=55 // pred_region
        %p669 = scmp.lt.s32.totalorder %s20, 1
        %s670 = scalar_select %p669, %s20, 1
        %s671 = smul.addr %s670, 8
        %s672 = scalar_lea.vmem %s6, %s671
      $region64: #{decoder_block_forward.4} parent=55 // pred_fallthru
        _
      // Predicated region
      $region65: #{decoder_block_forward.4} parent=55 // pred_check
        %p673 = pneg %p205
      $region66: #{decoder_block_forward.4} parent=55 // pred_check_branch
        %675 = sbr.rel (%p673) target = $region68
      $region67: #{decoder_block_forward.4} parent=55 // pred_region
        %p676 = scmp.lt.s32.totalorder %s20, 1
        %s677 = scalar_select %p676, %s20, 1
        %s678 = smul.addr %s677, 8
        %s679 = scalar_lea.vmem %s7, %s678
      $region68: #{decoder_block_forward.4} parent=55 // pred_fallthru
        _
    $region56: #{decoder_block_forward.4} parent=5 // pred_fallthru
      _
  $region6: #{decoder_block_forward.4} parent=0 // loop_footer
    %s18 = sadd.s32 1, %s14
  $region7: #{decoder_block_forward.4} parent=0 // loop_footer_branch
    %13 = sbr.rel target = $region3
  $region8: #{decoder_block_forward.4} parent=0 // loop_exit
    _

// kernel: decoder_block_forward.3
$region0: #{decoder_block_forward.3}
  #allocation0 [shape = 'u32[]', space=smem, size = 0x4, offset = 0x4, fixed_abs, tag = 'smem constant byte address 0x4 - core index']
  #allocation1 [shape = 'u32[144,128]{1,0:T(1,128)}', space=vmem, size = 0x12000, scoped, tag = 'internal scratch']
  %s0 = inlined_call_operand.vmem [shape: f32[2,8,64], index: 0, kind: input, shape index: {}]
  %s1 = inlined_call_operand.vmem [shape: f32[64,256], index: 1, kind: input, shape index: {}]
  %s2 = inlined_call_operand.vmem [shape: f32[3,256], index: 2, kind: input, shape index: {}]
  %s3 = inlined_call_operand.vmem [shape: f32[2,4,256], index: 3, kind: input, shape index: {}]
  %s4 = inlined_call_operand.vmem [shape: f32[8,108], index: 4, kind: input, shape index: {}]
  %s5 = inlined_call_operand.vmem [shape: f32[2,8,256], index: 5, kind: output, shape index: {0}]
  %s6 = inlined_call_operand.vmem [shape: f32[2,8,1], index: 6, kind: output, shape index: {1}]
  %s7 = inlined_call_operand.vmem [shape: f32[2,8,1], index: 7, kind: output, shape index: {2}]
  %8 = xla_tuple %s5, %s6, %s7
  %s9 = sld [smem:[#allocation0]]
  $region69: #{decoder_block_forward.3} parent=0
    _
  %s11 = ssub.s32 1, %s9
  %s12 = scalar_select 0, %s11, %s9
  loop: start=0, step=1, limit=4
  $region2: #{decoder_block_forward.3} parent=0 // loop_pre_header
    _
  $region3: #{decoder_block_forward.3} parent=0 // loop_header
    %s14 = sphi 0, %s18
    %p15 = scmp.ge.s32.totalorder %s14, 4
    %s24 = sphi 0, %s26
    %s27 = sphi 0, %s24
    %s28 = sphi 0, %s27
    %s44 = sphi 0, %s28
    %s48 = sphi 0, %s48
    %s50 = sphi 0, %s48
    %s51 = sphi 0, %s50
    %s65 = sphi 0, %s51
    %s69 = sphi 0, %s69
    %s71 = sphi 0, %s69
    %s72 = sphi 0, %s71
    %s86 = sphi 0, %s72
    %s92 = sphi 0, %s94
    %s95 = sphi 0, %s92
    %s96 = sphi 0, %s95
    %s112 = sphi 0, %s96
    %s116 = sphi 0, %s116
    %s118 = sphi 0, %s116
    %s119 = sphi 0, %s118
    %s133 = sphi 0, %s119
    %s139 = sphi 0, %s141
    %s142 = sphi 0, %s139
    %s143 = sphi 0, %s142
    %s159 = sphi 0, %s143
    %s165 = sphi 0, %s167
    %s168 = sphi 0, %s165
    %s169 = sphi 0, %s168
    %s185 = sphi 0, %s169
    %s191 = sphi 0, %s193
    %s194 = sphi 0, %s191
    %s195 = sphi 0, %s194
    %s211 = sphi 0, %s195
  $region4: #{decoder_block_forward.3} parent=0 // loop_header_branch
    %17 = sbr.rel (%p15) target = $region8
  $region5: #{decoder_block_forward.3} parent=0 // loop_body
    %s19 = ssub.s32 %s14, 1
    %s20 = ssub.s32 %s14, 2
    %s21 = sadd.s32 %s14, 1
    %s22 = ssub.s32 %s14, %s21
    %p23 = scmp.eq.s32.totalorder %s22, 0
    %s25 = sadd.s32 %s24, 1
    %s26 = scalar_select %p23, %s24, %s25
    %p29 = pneg %p23
    %p30 = scmp.eq.s32.totalorder %s14, 1
    %p31 = por %p29, %p30
    %p32 = scmp.ne.s32.totalorder %s24, %s27
    %p33 = scmp.eq.s32.totalorder %s14, 0
    %p34 = por %p32, %p33
    %p35 = scmp.ne.s32.totalorder %s24, %s27
    %p36 = scmp.eq.s32.totalorder %s19, 1
    %p37 = por %p35, %p36
    %p38 = scmp.ne.s32.totalorder %s27, %s28
    %p39 = scmp.eq.s32.totalorder %s19, 0
    %p40 = por %p38, %p39
    %p41 = scmp.ne.s32.totalorder %s27, %s28
    %p42 = scmp.eq.s32.totalorder %s20, 1
    %p43 = por %p41, %p42
    %p45 = scmp.ne.s32.totalorder %s28, %s44
    %p46 = scmp.eq.s32.totalorder %s20, 0
    %p47 = por %p45, %p46
    %s49 = sadd.s32 %s48, 1
    %p52 = scmp.eq.s32.totalorder %s14, 1
    %p53 = scmp.ne.s32.totalorder %s48, %s50
    %p54 = scmp.eq.s32.totalorder %s14, 0
    %p55 = por %p53, %p54
    %p56 = scmp.ne.s32.totalorder %s48, %s50
    %p57 = scmp.eq.s32.totalorder %s19, 1
    %p58 = por %p56, %p57
    %p59 = scmp.ne.s32.totalorder %s50, %s51
    %p60 = scmp.eq.s32.totalorder %s19, 0
    %p61 = por %p59, %p60
    %p62 = scmp.ne.s32.totalorder %s50, %s51
    %p63 = scmp.eq.s32.totalorder %s20, 1
    %p64 = por %p62, %p63
    %p66 = scmp.ne.s32.totalorder %s51, %s65
    %p67 = scmp.eq.s32.totalorder %s20, 0
    %p68 = por %p66, %p67
    %s70 = sadd.s32 %s69, 1
    %p73 = scmp.eq.s32.totalorder %s14, 1
    %p74 = scmp.ne.s32.totalorder %s69, %s71
    %p75 = scmp.eq.s32.totalorder %s14, 0
    %p76 = por %p74, %p75
    %p77 = scmp.ne.s32.totalorder %s69, %s71
    %p78 = scmp.eq.s32.totalorder %s19, 1
    %p79 = por %p77, %p78
    %p80 = scmp.ne.s32.totalorder %s71, %s72
    %p81 = scmp.eq.s32.totalorder %s19, 0
    %p82 = por %p80, %p81
    %p83 = scmp.ne.s32.totalorder %s71, %s72
    %p84 = scmp.eq.s32.totalorder %s20, 1
    %p85 = por %p83, %p84
    %p87 = scmp.ne.s32.totalorder %s72, %s86
    %p88 = scmp.eq.s32.totalorder %s20, 0
    %p89 = por %p87, %p88
    %s90 = ssub.s32 %s14, %s21
    %p91 = scmp.eq.s32.totalorder %s90, 0
    %s93 = sadd.s32 %s92, 1
    %s94 = scalar_select %p91, %s92, %s93
    %p97 = pneg %p91
    %p98 = scmp.eq.s32.totalorder %s14, 1
    %p99 = por %p97, %p98
    %p100 = scmp.ne.s32.totalorder %s92, %s95
    %p101 = scmp.eq.s32.totalorder %s14, 0
    %p102 = por %p100, %p101
    %p103 = scmp.ne.s32.totalorder %s92, %s95
    %p104 = scmp.eq.s32.totalorder %s19, 1
    %p105 = por %p103, %p104
    %p106 = scmp.ne.s32.totalorder %s95, %s96
    %p107 = scmp.eq.s32.totalorder %s19, 0
    %p108 = por %p106, %p107
    %p109 = scmp.ne.s32.totalorder %s95, %s96
    %p110 = scmp.eq.s32.totalorder %s20, 1
    %p111 = por %p109, %p110
    %p113 = scmp.ne.s32.totalorder %s96, %s112
    %p114 = scmp.eq.s32.totalorder %s20, 0
    %p115 = por %p113, %p114
    %s117 = sadd.s32 %s116, 1
    %p120 = scmp.eq.s32.totalorder %s14, 1
    %p121 = scmp.ne.s32.totalorder %s116, %s118
    %p122 = scmp.eq.s32.totalorder %s14, 0
    %p123 = por %p121, %p122
    %p124 = scmp.ne.s32.totalorder %s116, %s118
    %p125 = scmp.eq.s32.totalorder %s19, 1
    %p126 = por %p124, %p125
    %p127 = scmp.ne.s32.totalorder %s118, %s119
    %p128 = scmp.eq.s32.totalorder %s19, 0
    %p129 = por %p127, %p128
    %p130 = scmp.ne.s32.totalorder %s118, %s119
    %p131 = scmp.eq.s32.totalorder %s20, 1
    %p132 = por %p130, %p131
    %p134 = scmp.ne.s32.totalorder %s119, %s133
    %p135 = scmp.eq.s32.totalorder %s20, 0
    %p136 = por %p134, %p135
    %s137 = ssub.s32 %s14, %s21
    %p138 = scmp.eq.s32.totalorder %s137, 0
    %s140 = sadd.s32 %s139, 1
    %s141 = scalar_select %p138, %s139, %s140
    %p144 = pneg %p138
    %p145 = scmp.eq.s32.totalorder %s14, 1
    %p146 = por %p144, %p145
    %p147 = scmp.ne.s32.totalorder %s139, %s142
    %p148 = scmp.eq.s32.totalorder %s14, 0
    %p149 = por %p147, %p148
    %p150 = scmp.ne.s32.totalorder %s139, %s142
    %p151 = scmp.eq.s32.totalorder %s19, 1
    %p152 = por %p150, %p151
    %p153 = scmp.ne.s32.totalorder %s142, %s143
    %p154 = scmp.eq.s32.totalorder %s19, 0
    %p155 = por %p153, %p154
    %p156 = scmp.ne.s32.totalorder %s142, %s143
    %p157 = scmp.eq.s32.totalorder %s20, 1
    %p158 = por %p156, %p157
    %p160 = scmp.ne.s32.totalorder %s143, %s159
    %p161 = scmp.eq.s32.totalorder %s20, 0
    %p162 = por %p160, %p161
    %s163 = ssub.s32 %s14, %s21
    %p164 = scmp.eq.s32.totalorder %s163, 0
    %s166 = sadd.s32 %s165, 1
    %s167 = scalar_select %p164, %s165, %s166
    %p170 = pneg %p164
    %p171 = scmp.eq.s32.totalorder %s14, 1
    %p172 = por %p170, %p171
    %p173 = scmp.ne.s32.totalorder %s165, %s168
    %p174 = scmp.eq.s32.totalorder %s14, 0
    %p175 = por %p173, %p174
    %p176 = scmp.ne.s32.totalorder %s165, %s168
    %p177 = scmp.eq.s32.totalorder %s19, 1
    %p178 = por %p176, %p177
    %p179 = scmp.ne.s32.totalorder %s168, %s169
    %p180 = scmp.eq.s32.totalorder %s19, 0
    %p181 = por %p179, %p180
    %p182 = scmp.ne.s32.totalorder %s168, %s169
    %p183 = scmp.eq.s32.totalorder %s20, 1
    %p184 = por %p182, %p183
    %p186 = scmp.ne.s32.totalorder %s169, %s185
    %p187 = scmp.eq.s32.totalorder %s20, 0
    %p188 = por %p186, %p187
    %s189 = ssub.s32 %s14, %s21
    %p190 = scmp.eq.s32.totalorder %s189, 0
    %s192 = sadd.s32 %s191, 1
    %s193 = scalar_select %p190, %s191, %s192
    %p196 = pneg %p190
    %p197 = scmp.eq.s32.totalorder %s14, 1
    %p198 = por %p196, %p197
    %p199 = scmp.ne.s32.totalorder %s191, %s194
    %p200 = scmp.eq.s32.totalorder %s14, 0
    %p201 = por %p199, %p200
    %p202 = scmp.ne.s32.totalorder %s191, %s194
    %p203 = scmp.eq.s32.totalorder %s19, 1
    %p204 = por %p202, %p203
    %p205 = scmp.ne.s32.totalorder %s194, %s195
    %p206 = scmp.eq.s32.totalorder %s19, 0
    %p207 = por %p205, %p206
    %p208 = scmp.ne.s32.totalorder %s194, %s195
    %p209 = scmp.eq.s32.totalorder %s20, 1
    %p210 = por %p208, %p209
    %p212 = scmp.ne.s32.totalorder %s195, %s211
    %p213 = scmp.eq.s32.totalorder %s20, 0
    %p214 = por %p212, %p213
    %p215 = scmp.le.s32.totalorder 1, %s14
    %p216 = scmp.lt.s32.totalorder %s14, 3
    %p217 = pnand %p215, %p216
    %p218 = pneg %p217
    // Predicated region
    $region9: #{decoder_block_forward.3} parent=5 // pred_check
      _
    $region10: #{decoder_block_forward.3} parent=5 // pred_check_branch
      %220 = sbr.rel (%p217) target = $region12
    $region11: #{decoder_block_forward.3} parent=5 // pred_region
      %s221 = ssub.s32 %s14, 1
      // Predicated region
      $region13: #{decoder_block_forward.3} parent=11 // pred_check
        %p222 = pneg %p61
      $region14: #{decoder_block_forward.3} parent=11 // pred_check_branch
        %224 = sbr.rel (%p222) target = $region16
      $region15: #{decoder_block_forward.3} parent=11 // pred_region
        _
      $region16: #{decoder_block_forward.3} parent=11 // pred_fallthru
        _
      // Predicated region
      $region17: #{decoder_block_forward.3} parent=11 // pred_check
        %p225 = pneg %p82
      $region18: #{decoder_block_forward.3} parent=11 // pred_check_branch
        %227 = sbr.rel (%p225) target = $region20
      $region19: #{decoder_block_forward.3} parent=11 // pred_region
        _
      $region20: #{decoder_block_forward.3} parent=11 // pred_fallthru
        _
      // Predicated region
      $region21: #{decoder_block_forward.3} parent=11 // pred_check
        %p228 = pneg %p129
      $region22: #{decoder_block_forward.3} parent=11 // pred_check_branch
        %230 = sbr.rel (%p228) target = $region24
      $region23: #{decoder_block_forward.3} parent=11 // pred_region
        _
      $region24: #{decoder_block_forward.3} parent=11 // pred_fallthru
        _
    $region12: #{decoder_block_forward.3} parent=5 // pred_fallthru
      _
    %p231 = scmp.lt.s32.totalorder %s14, 2
    // Predicated region
    $region25: #{decoder_block_forward.3} parent=5 // pred_check
      %p232 = pneg %p231
    $region26: #{decoder_block_forward.3} parent=5 // pred_check_branch
      %234 = sbr.rel (%p232) target = $region28
    $region27: #{decoder_block_forward.3} parent=5 // pred_region
      // Predicated region
      $region29: #{decoder_block_forward.3} parent=27 // pred_check
        %p235 = pneg %p34
      $region30: #{decoder_block_forward.3} parent=27 // pred_check_branch
        %237 = sbr.rel (%p235) target = $region32
      $region31: #{decoder_block_forward.3} parent=27 // pred_region
        %p238 = scmp.lt.s32.totalorder %s14, 1
        %s239 = scalar_select %p238, %s14, 1
        %s240 = smul.addr %s239, 8
        %s241 = scalar_lea.vmem %s0, %s240
      $region32: #{decoder_block_forward.3} parent=27 // pred_fallthru
        _
      // Predicated region
      $region33: #{decoder_block_forward.3} parent=27 // pred_check
        %p242 = pneg %p102
      $region34: #{decoder_block_forward.3} parent=27 // pred_check_branch
        %244 = sbr.rel (%p242) target = $region36
      $region35: #{decoder_block_forward.3} parent=27 // pred_region
        %p245 = scmp.lt.s32.totalorder %s14, 1
        %s246 = scalar_select %p245, %s14, 1
        %s247 = smul.addr %s246, 2
        %s248 = smul.addr %s247, 4
        %s249 = scalar_lea.vmem %s3, %s248
      $region36: #{decoder_block_forward.3} parent=27 // pred_fallthru
        _
    $region28: #{decoder_block_forward.3} parent=5 // pred_fallthru
      _
    %p250 = scmp.le.s32.totalorder 1, %s14
    %p251 = scmp.lt.s32.totalorder %s14, 3
    %p252 = pnand %p250, %p251
    %p253 = pneg %p252
    // Predicated region
    $region37: #{decoder_block_forward.3} parent=5 // pred_check
      _
    $region38: #{decoder_block_forward.3} parent=5 // pred_check_branch
      %255 = sbr.rel (%p252) target = $region40
    $region39: #{decoder_block_forward.3} parent=5 // pred_region
      %s256 = ssub.s32 %s14, 1
      %p257 = scmp.lt.s32.totalorder %s19, 1
      %s258 = scalar_select %p257, %s19, 1
      %s259 = smul.addr %s258, 8
      %s260 = scalar_lea.vmem %s0, %s259
      %p261 = pneg %p40
      %p262 = pneg %p37
      %p263 = pneg %p61
      %p264 = pneg %p58
      %p265 = pneg %p82
      %p266 = pneg %p79
      %p267 = scmp.lt.s32.totalorder %s19, 1
      %s268 = scalar_select %p267, %s19, 1
      %s269 = smul.addr %s268, 2
      %s270 = smul.addr %s269, 4
      %s271 = scalar_lea.vmem %s3, %s270
      %p272 = pneg %p108
      %p273 = pneg %p105
      %p274 = pneg %p129
      %p275 = pneg %p126
      %p276 = pneg %p155
      %p277 = pneg %p152
      %p278 = scmp.lt.s32.totalorder %s19, 1
      %s279 = scalar_select %p278, %s19, 1
      %s280 = smul.addr %s279, 2
      %s281 = smul.addr %s280, 8
      %s282 = scalar_lea.vmem %s5, %s281
      %p283 = pneg %p181
      %p284 = pneg %p178
      %p285 = scmp.lt.s32.totalorder %s19, 1
      %s286 = scalar_select %p285, %s19, 1
      %s287 = smul.addr %s286, 8
      %s288 = scalar_lea.vmem %s6, %s287
      %p289 = pneg %p207
      %p290 = pneg %p204
      %p291 = scmp.lt.s32.totalorder %s19, 1
      %s292 = scalar_select %p291, %s19, 1
      %s293 = smul.addr %s292, 8
      %s294 = scalar_lea.vmem %s7, %s293
      %p295 = scmp.lt.s32.totalorder %s19, 1
      %s296 = scalar_select %p295, %s19, 1
      %s297 = smul.addr %s296, 8
      %s298 = scalar_lea.vmem %s0, %s297
      %p299 = scmp.lt.s32.totalorder %s19, 1
      %s300 = scalar_select %p299, %s19, 1
      %s301 = smul.addr %s300, 2
      %s302 = smul.addr %s301, 4
      %s303 = scalar_lea.vmem %s3, %s302
      %p304 = scmp.lt.s32.totalorder %s19, 1
      %s305 = scalar_select %p304, %s19, 1
      %s306 = smul.addr %s305, 2
      %s307 = smul.addr %s306, 8
      %s308 = scalar_lea.vmem %s5, %s307
      %p309 = scmp.lt.s32.totalorder %s19, 1
      %s310 = scalar_select %p309, %s19, 1
      %s311 = smul.addr %s310, 8
      %s312 = scalar_lea.vmem %s6, %s311
      %p313 = scmp.lt.s32.totalorder %s19, 1
      %s314 = scalar_select %p313, %s19, 1
      %s315 = smul.addr %s314, 8
      %s316 = scalar_lea.vmem %s7, %s315
      %v317 = vld [vmem:[%s298] sm:$0xff]
      %v318 = vld [vmem:[%s1] sm:$0xff]
      %v319 = vld [vmem:[%s1 + $0x8] sm:$0xff]
      %v320 = vld [vmem:[%s1 + $0x10] sm:$0xff]
      %v321 = vld [vmem:[%s1 + $0x18] sm:$0xff]
      %v322 = vld [vmem:[%s1 + $0x20] sm:$0xff]
      %v323 = vld [vmem:[%s1 + $0x28] sm:$0xff]
      %v324 = vld [vmem:[%s1 + $0x30] sm:$0xff]
      %v325 = vld [vmem:[%s1 + $0x38] sm:$0xff]
      %v326 = vld [vmem:[%s1 + $0x40] sm:$0xff]
      %v327 = vld [vmem:[%s1 + $0x48] sm:$0xff]
      %v328 = vld [vmem:[%s1 + $0x50] sm:$0xff]
      %v329 = vld [vmem:[%s1 + $0x58] sm:$0xff]
      %v330 = vld [vmem:[%s1 + $0x60] sm:$0xff]
      %v331 = vld [vmem:[%s1 + $0x68] sm:$0xff]
      %v332 = vld [vmem:[%s1 + $0x70] sm:$0xff]
      %v333 = vld [vmem:[%s1 + $0x78] sm:$0xff]
      %vm334 = vcmask 523264
      %v336 = vsel %vm334, %v317, 0
      %338 = vmatprep.subr.mxu0 %v319
      %339 = vmatpush1.msra.mxu0 %v318
      %340 = vmatprep.subr.mxu0 %v321
      %341 = vmatpush1.msra.mxu0 %v320
      %342 = vmatprep.subr.mxu0 %v323
      %343 = vmatpush1.msra.mxu0 %v322
      %344 = vmatprep.subr.mxu0 %v325
      %345 = vmatpush1.msra.mxu0 %v324
      %346 = vmatprep.subr.mxu0 %v327
      %347 = vmatpush1.msra.mxu0 %v326
      %348 = vmatprep.subr.mxu0 %v329
      %349 = vmatpush1.msra.mxu0 %v328
      %350 = vmatprep.subr.mxu0 %v331
      %351 = vmatpush1.msra.mxu0 %v330
      %352 = vmatprep.subr.mxu0 %v333
      %353 = vmatpush1.msra.mxu0 %v332
      %354 = vmatprep.subr.mxu0 0.0
      %355 = vmatpush1.msra.mxu0 0.0
      %356 = vmatprep.subr.mxu0 0.0
      %357 = vmatpush1.msra.mxu0 0.0
      %358 = vmatprep.subr.mxu0 0.0
      %359 = vmatpush1.msra.mxu0 0.0
      %360 = vmatprep.subr.mxu0 0.0
      %361 = vmatpush1.msra.mxu0 0.0
      %362 = vmatprep.subr.mxu0 0.0
      %363 = vmatpush1.msra.mxu0 0.0
      %364 = vmatprep.subr.mxu0 0.0
      %365 = vmatpush1.msra.mxu0 0.0
      %366 = vmatprep.subr.mxu0 0.0
      %367 = vmatpush1.msra.mxu0 0.0
      %368 = vmatprep.subr.mxu0 0.0
      %369 = vmatpush1.msra.mxu0 0.0
      %370 = vmatprep.subr.mxu0 0.0
      %371 = vmatpush1.msra.mxu0 0.0
      %372 = vmatprep.subr.mxu0 0.0
      %373 = vmatpush1.msra.mxu0 0.0
      %374 = vmatprep.subr.mxu0 0.0
      %375 = vmatpush1.msra.mxu0 0.0
      %376 = vmatprep.subr.mxu0 0.0
      %377 = vmatpush1.msra.mxu0 0.0
      %378 = vmatprep.subr.mxu0 0.0
      %379 = vmatpush1.msra.mxu0 0.0
      %380 = vmatprep.subr.mxu0 0.0
      %381 = vmatpush1.msra.mxu0 0.0
      %382 = vmatprep.subr.mxu0 0.0
      %383 = vmatpush1.msra.mxu0 0.0
      %384 = vmatprep.subr.mxu0 0.0
      %385 = vmatpush1.msra.mxu0 0.0
      %386 = vmatprep.subr.mxu0 0.0
      %387 = vmatpush1.msra.mxu0 0.0
      %388 = vmatprep.subr.mxu0 0.0
      %389 = vmatpush1.msra.mxu0 0.0
      %390 = vmatprep.subr.mxu0 0.0
      %391 = vmatpush1.msra.mxu0 0.0
      %392 = vmatprep.subr.mxu0 0.0
      %393 = vmatpush1.msra.mxu0 0.0
      %394 = vmatprep.subr.mxu0 0.0
      %395 = vmatpush1.msra.mxu0 0.0
      %396 = vmatprep.subr.mxu0 0.0
      %397 = vmatpush1.msra.mxu0 0.0
      %398 = vmatprep.subr.mxu0 0.0
      %399 = vmatpush1.msra.mxu0 0.0
      %400 = vmatprep.subr.mxu0 0.0
      %401 = vmatpush1.msra.mxu0 0.0
      %402 = vmatprep.mubr.f32.mxu0 0.0
      %403 = vmatmul.mubr.f32.gmra.mrb[0].mxu0 %v336
      %v404 = vpop.f32.mrb[0].mxu0
      %v405 = vadd.f32 0.0, %v404
      %v406 = vpop.f32.mrb[0].mxu0
      %v407 = vadd.f32 0.0, %v406
      %408 = vdwg.mxu0
      %v409 = vld [vmem:[%s303] sm:$0xff]
      %v411 = vcombine.high %v409, %v409
      %v412 = vld [vmem:[%s4] sm:$0xff]
      %v413 = vld [vmem:[%s2] sm:$0x77]
      %416 = vrot.lane.b32.xlu0 %v405, 17
      %v417 = vpop.permute.xlu0 %416
      %418 = vrot.lane.b32.xlu0 %v407, 17
      %v419 = vpop.permute.xlu0 %418
      %420 = vrot.lane.b32.xlu0 %v409, 17
      %v421 = vpop.permute.xlu0 %420
      %422 = vrot.lane.b32.xlu0 %v411, 17
      %v423 = vpop.permute.xlu0 %422
      %vm424 = vcmask 138240
      %v425 = vsel %vm424, %v417, %v419
      %v426 = vsel %vm424, %v421, %v423
      %v433 = vsel %vm424, 0.0, %v417
      %v434 = vsel %vm424, 0.0, %v421
      %v435 = vsel %vm424, %v419, 0.0
      %v436 = vsel %vm424, %v423, 0.0
      %v438 = vlaneseq
      %v439 = vshrl.u32 %v438, 7
      %v440 = vsub.s32 0, %v439
      %v441 = vrot.slane %v413, %v440
      %v442 = vlaneseq
      %v443 = vshrl.u32 %v442, 7
      %v444 = vsub.s32 4, %v443
      %v445 = vrot.slane %v413, %v444
      %v448 = vlaneseq
      %v449 = vshrl.u32 %v448, 7
      %v450 = vsub.s32 0, %v449
      %v451 = vrot.slane %v441, %v450
      %v452 = vlaneseq
      %v453 = vshrl.u32 %v452, 7
      %v454 = vsub.s32 0, %v453
      %v455 = vrot.slane %v445, %v454
      %v456 = vmul.f32 %v433, %v451
      %v457 = vmul.f32 %v425, %v455
      %v458 = vmul.f32 %v434, %v451
      %v459 = vmul.f32 %v426, %v455
      %v460 = vlaneseq
      %v461 = vshrl.u32 %v460, 7
      %v462 = vsub.s32 2, %v461
      %v463 = vrot.slane %v413, %v462
      %v464 = vlaneseq
      %v465 = vshrl.u32 %v464, 7
      %v466 = vsub.s32 6, %v465
      %v467 = vrot.slane %v413, %v466
      %v470 = vlaneseq
      %v471 = vshrl.u32 %v470, 7
      %v472 = vsub.s32 2, %v471
      %v473 = vrot.slane %v463, %v472
      %v474 = vlaneseq
      %v475 = vshrl.u32 %v474, 7
      %v476 = vsub.s32 2, %v475
      %v477 = vrot.slane %v467, %v476
      %480 = vrot.lane.b32.xlu0 %v473, 2
      %v481 = vpop.permute.xlu0 %480
      %482 = vrot.lane.b32.xlu0 %v477, 2
      %v483 = vpop.permute.xlu0 %482
      %vm484 = vcmask 15360
      %v485 = vsel %vm484, %v481, %v483
      %v489 = vmul.f32 %v433, %v481
      %v490 = vmul.f32 %v425, %v485
      %v491 = vmul.f32 %v435, %v483
      %v492 = vmul.f32 %v434, %v481
      %v493 = vmul.f32 %v426, %v485
      %v494 = vmul.f32 %v436, %v483
      %497 = vrot.lane.b32.xlu0 %v451, 16
      %v498 = vpop.permute.xlu0 %497
      %499 = vrot.lane.b32.xlu0 %v455, 16
      %v500 = vpop.permute.xlu0 %499
      %vm501 = vcmask 130048
      %v502 = vsel %vm501, %v498, %v500
      %v506 = vmul.f32 %v433, %v498
      %v507 = vmul.f32 %v425, %v502
      %v508 = vmul.f32 %v435, %v500
      %v509 = vmul.f32 %v434, %v498
      %v510 = vmul.f32 %v426, %v502
      %v511 = vmul.f32 %v436, %v500
      %512 = vrot.lane.b32.xlu0 %v473, 18
      %v513 = vpop.permute.xlu0 %512
      %514 = vrot.lane.b32.xlu0 %v477, 18
      %v515 = vpop.permute.xlu0 %514
      %vm516 = vcmask 146432
      %v517 = vsel %vm516, %v513, %v515
      %v521 = vmul.f32 %v433, %v513
      %v522 = vmul.f32 %v425, %v517
      %v523 = vmul.f32 %v435, %v515
      %v524 = vmul.f32 %v434, %v513
      %v525 = vmul.f32 %v426, %v517
      %v526 = vmul.f32 %v436, %v515
      %527 = vrot.lane.b32.xlu0 %v451, 32
      %v528 = vpop.permute.xlu0 %527
      %529 = vrot.lane.b32.xlu0 %v455, 32
      %v530 = vpop.permute.xlu0 %529
      %vm531 = vcmask 261120
      %v532 = vsel %vm531, %v528, %v530
      %v536 = vmul.f32 %v433, %v528
      %v537 = vmul.f32 %v425, %v532
      %v538 = vmul.f32 %v435, %v530
      %v539 = vmul.f32 %v434, %v528
      %v540 = vmul.f32 %v426, %v532
      %v541 = vmul.f32 %v436, %v530
      %542 = vrot.lane.b32.xlu0 %v473, 34
      %v543 = vpop.permute.xlu0 %542
      %544 = vrot.lane.b32.xlu0 %v477, 34
      %v545 = vpop.permute.xlu0 %544
      %vm546 = vcmask 277504
      %v547 = vsel %vm546, %v543, %v545
      %v551 = vmul.f32 %v433, %v543
      %v552 = vmul.f32 %v425, %v547
      %v553 = vmul.f32 %v435, %v545
      %v554 = vmul.f32 %v434, %v543
      %v555 = vmul.f32 %v426, %v547
      %v556 = vmul.f32 %v436, %v545
      %vm561 = vcmask 1043456
      %v562 = vrot.slane %v433, 4
      %v563 = vrot.slane %v425, 4
      %v564 = vrot.slane %v435, 4
      %v565 = vrot.slane %v434, 4
      %v566 = vsel %vm561, %v562, %v565
      %v567 = vrot.slane %v426, 4
      %v568 = vsel %vm561, %v563, %v567
      %v569 = vrot.slane %v436, 4
      %v570 = vsel %vm561, %v564, %v569
      %571 = vrot.lane.b32.xlu0 %v562, 127
      %v572 = vpop.permute.xlu0 %571
      %573 = vrot.lane.b32.xlu0 %v563, 127
      %v574 = vpop.permute.xlu0 %573
      %575 = vrot.lane.b32.xlu0 %v564, 127
      %v576 = vpop.permute.xlu0 %575
      %577 = vrot.lane.b32.xlu0 %v566, 127
      %v578 = vpop.permute.xlu0 %577
      %579 = vrot.lane.b32.xlu0 %v568, 127
      %v580 = vpop.permute.xlu0 %579
      %581 = vrot.lane.b32.xlu0 %v570, 127
      %v582 = vpop.permute.xlu0 %581
      %vm583 = vcmask 1039360
      %v584 = vsel %vm583, %v572, %v574
      %v585 = vsel %vm583, %v574, %v576
      %v586 = vsel %vm583, %v578, %v580
      %v587 = vsel %vm583, %v580, %v582
      %598 = vrot.lane.b32.xlu0 %v489, 126
      %v599 = vpop.permute.xlu0 %598
      %600 = vrot.lane.b32.xlu0 %v490, 126
      %v601 = vpop.permute.xlu0 %600
      %602 = vrot.lane.b32.xlu0 %v491, 126
      %v603 = vpop.permute.xlu0 %602
      %604 = vrot.lane.b32.xlu0 %v492, 126
      %v605 = vpop.permute.xlu0 %604
      %606 = vrot.lane.b32.xlu0 %v493, 126
      %v607 = vpop.permute.xlu0 %606
      %608 = vrot.lane.b32.xlu0 %v494, 126
      %v609 = vpop.permute.xlu0 %608
      %vm610 = vcmask 1031168
      %v611 = vsel %vm610, %v599, %v601
      %v612 = vsel %vm610, %v601, %v603
      %v613 = vsel %vm610, %v605, %v607
      %v614 = vsel %vm610, %v607, %v609
      %v625 = vrot.slane %v506, 4
      %v626 = vrot.slane %v507, 4
      %v627 = vrot.slane %v508, 4
      %v628 = vrot.slane %v509, 4
      %v629 = vsel %vm561, %v625, %v628
      %v630 = vrot.slane %v510, 4
      %v631 = vsel %vm561, %v626, %v630
      %v632 = vrot.slane %v511, 4
      %v633 = vsel %vm561, %v627, %v632
      %634 = vrot.lane.b32.xlu0 %v625, 112
      %v635 = vpop.permute.xlu0 %634
      %636 = vrot.lane.b32.xlu0 %v626, 112
      %v637 = vpop.permute.xlu0 %636
      %638 = vrot.lane.b32.xlu0 %v627, 112
      %v639 = vpop.permute.xlu0 %638
      %640 = vrot.lane.b32.xlu0 %v629, 112
      %v641 = vpop.permute.xlu0 %640
      %642 = vrot.lane.b32.xlu0 %v631, 112
      %v643 = vpop.permute.xlu0 %642
      %644 = vrot.lane.b32.xlu0 %v633, 112
      %v645 = vpop.permute.xlu0 %644
      %vm646 = vcmask 916480
      %v647 = vsel %vm646, %v635, %v637
      %v648 = vsel %vm646, %v637, %v639
      %v649 = vsel %vm646, %v641, %v643
      %v650 = vsel %vm646, %v643, %v645
      %655 = vrot.lane.b32.xlu0 %v433, 111
      %v656 = vpop.permute.xlu0 %655
      %657 = vrot.lane.b32.xlu0 %v425, 111
      %v658 = vpop.permute.xlu0 %657
      %659 = vrot.lane.b32.xlu0 %v435, 111
      %v660 = vpop.permute.xlu0 %659
      %661 = vrot.lane.b32.xlu0 %v434, 111
      %v662 = vpop.permute.xlu0 %661
      %663 = vrot.lane.b32.xlu0 %v426, 111
      %v664 = vpop.permute.xlu0 %663
      %665 = vrot.lane.b32.xlu0 %v436, 111
      %v666 = vpop.permute.xlu0 %665
      %vm667 = vcmask 908288
      %v668 = vsel %vm667, %v656, %v658
      %v669 = vsel %vm667, %v658, %v660
      %v670 = vsel %vm667, %v662, %v664
      %v671 = vsel %vm667, %v664, %v666
      %v682 = vrot.slane %v521, 4
      %v683 = vrot.slane %v522, 4
      %v684 = vrot.slane %v523, 4
      %v685 = vrot.slane %v524, 4
      %v686 = vsel %vm561, %v682, %v685
      %v687 = vrot.slane %v525, 4
      %v688 = vsel %vm561, %v683, %v687
      %v689 = vrot.slane %v526, 4
      %v690 = vsel %vm561, %v684, %v689
      %691 = vrot.lane.b32.xlu0 %v682, 110
      %v692 = vpop.permute.xlu0 %691
      %693 = vrot.lane.b32.xlu0 %v683, 110
      %v694 = vpop.permute.xlu0 %693
      %695 = vrot.lane.b32.xlu0 %v684, 110
      %v696 = vpop.permute.xlu0 %695
      %697 = vrot.lane.b32.xlu0 %v686, 110
      %v698 = vpop.permute.xlu0 %697
      %699 = vrot.lane.b32.xlu0 %v688, 110
      %v700 = vpop.permute.xlu0 %699
      %701 = vrot.lane.b32.xlu0 %v690, 110
      %v702 = vpop.permute.xlu0 %701
      %vm703 = vcmask 900096
      %v704 = vsel %vm703, %v692, %v694
      %v705 = vsel %vm703, %v694, %v696
      %v706 = vsel %vm703, %v698, %v700
      %v707 = vsel %vm703, %v700, %v702
      %718 = vrot.lane.b32.xlu0 %v536, 96
      %v719 = vpop.permute.xlu0 %718
      %720 = vrot.lane.b32.xlu0 %v537, 96
      %v721 = vpop.permute.xlu0 %720
      %722 = vrot.lane.b32.xlu0 %v538, 96
      %v723 = vpop.permute.xlu0 %722
      %724 = vrot.lane.b32.xlu0 %v539, 96
      %v725 = vpop.permute.xlu0 %724
      %726 = vrot.lane.b32.xlu0 %v540, 96
      %v727 = vpop.permute.xlu0 %726
      %728 = vrot.lane.b32.xlu0 %v541, 96
      %v729 = vpop.permute.xlu0 %728
      %vm730 = vcmask 785408
      %v731 = vsel %vm730, %v719, %v721
      %v732 = vsel %vm730, %v721, %v723
      %v733 = vsel %vm730, %v725, %v727
      %v734 = vsel %vm730, %v727, %v729
      %739 = vrot.lane.b32.xlu0 %v562, 95
      %v740 = vpop.permute.xlu0 %739
      %741 = vrot.lane.b32.xlu0 %v563, 95
      %v742 = vpop.permute.xlu0 %741
      %743 = vrot.lane.b32.xlu0 %v564, 95
      %v744 = vpop.permute.xlu0 %743
      %745 = vrot.lane.b32.xlu0 %v566, 95
      %v746 = vpop.permute.xlu0 %745
      %747 = vrot.lane.b32.xlu0 %v568, 95
      %v748 = vpop.permute.xlu0 %747
      %749 = vrot.lane.b32.xlu0 %v570, 95
      %v750 = vpop.permute.xlu0 %749
      %vm751 = vcmask 777216
      %v752 = vsel %vm751, %v740, %v742
      %v753 = vsel %vm751, %v742, %v744
      %v754 = vsel %vm751, %v746, %v748
      %v755 = vsel %vm751, %v748, %v750
      %766 = vrot.lane.b32.xlu0 %v551, 94
      %v767 = vpop.permute.xlu0 %766
      %768 = vrot.lane.b32.xlu0 %v552, 94
      %v769 = vpop.permute.xlu0 %768
      %770 = vrot.lane.b32.xlu0 %v553, 94
      %v771 = vpop.permute.xlu0 %770
      %772 = vrot.lane.b32.xlu0 %v554, 94
      %v773 = vpop.permute.xlu0 %772
      %774 = vrot.lane.b32.xlu0 %v555, 94
      %v775 = vpop.permute.xlu0 %774
      %776 = vrot.lane.b32.xlu0 %v556, 94
      %v777 = vpop.permute.xlu0 %776
      %vm778 = vcmask 769024
      %v779 = vsel %vm778, %v767, %v769
      %v780 = vsel %vm778, %v769, %v771
      %v781 = vsel %vm778, %v773, %v775
      %v782 = vsel %vm778, %v775, %v777
      %v785 = vsel %vm561, %v458, %v584
      %v786 = vsel %vm561, %v459, %v585
      %v787 = vsel %vm561, %v613, %v647
      %v788 = vsel %vm561, %v614, %v648
      %v789 = vsel %vm561, %v670, %v704
      %v790 = vsel %vm561, %v671, %v705
      %v791 = vsel %vm561, %v733, %v752
      %v792 = vsel %vm561, %v734, %v753
      %vm793 = vcmask 883712
      %v795 = vsel %vm793, %v412, 0
      %v797 = vsel %vm561, %v781, 0
      %v799 = vsel %vm561, %v782, 0
      %801 = vmatprep.subr.mxu0 %v457
      %802 = vmatpush1.msra.mxu0 %v456
      %803 = vmatprep.subr.mxu0 %v786
      %804 = vmatpush1.msra.mxu0 %v785
      %805 = vmatprep.subr.mxu0 %v587
      %806 = vmatpush1.msra.mxu0 %v586
      %807 = vmatprep.subr.mxu0 %v612
      %808 = vmatpush1.msra.mxu0 %v611
      %809 = vmatprep.subr.mxu0 %v788
      %810 = vmatpush1.msra.mxu0 %v787
      %811 = vmatprep.subr.mxu0 %v650
      %812 = vmatpush1.msra.mxu0 %v649
      %813 = vmatprep.subr.mxu0 %v669
      %814 = vmatpush1.msra.mxu0 %v668
      %815 = vmatprep.subr.mxu0 %v790
      %816 = vmatpush1.msra.mxu0 %v789
      %817 = vmatprep.subr.mxu0 %v707
      %818 = vmatpush1.msra.mxu0 %v706
      %819 = vmatprep.subr.mxu0 %v732
      %820 = vmatpush1.msra.mxu0 %v731
      %821 = vmatprep.subr.mxu0 %v792
      %822 = vmatpush1.msra.mxu0 %v791
      %823 = vmatprep.subr.mxu0 %v755
      %824 = vmatpush1.msra.mxu0 %v754
      %825 = vmatprep.subr.mxu0 %v780
      %826 = vmatpush1.msra.mxu0 %v779
      %827 = vmatprep.subr.mxu0 %v799
      %828 = vmatpush1.msra.mxu0 %v797
      %829 = vmatprep.subr.mxu0 0.0
      %830 = vmatpush1.msra.mxu0 0.0
      %831 = vmatprep.subr.mxu0 0.0
      %832 = vmatpush1.msra.mxu0 0.0
      %833 = vmatprep.subr.mxu0 0.0
      %834 = vmatpush1.msra.mxu0 0.0
      %835 = vmatprep.subr.mxu0 0.0
      %836 = vmatpush1.msra.mxu0 0.0
      %837 = vmatprep.subr.mxu0 0.0
      %838 = vmatpush1.msra.mxu0 0.0
      %839 = vmatprep.subr.mxu0 0.0
      %840 = vmatpush1.msra.mxu0 0.0
      %841 = vmatprep.subr.mxu0 0.0
      %842 = vmatpush1.msra.mxu0 0.0
      %843 = vmatprep.subr.mxu0 0.0
      %844 = vmatpush1.msra.mxu0 0.0
      %845 = vmatprep.subr.mxu0 0.0
      %846 = vmatpush1.msra.mxu0 0.0
      %847 = vmatprep.subr.mxu0 0.0
      %848 = vmatpush1.msra.mxu0 0.0
      %849 = vmatprep.subr.mxu0 0.0
      %850 = vmatpush1.msra.mxu0 0.0
      %851 = vmatprep.subr.mxu0 0.0
      %852 = vmatpush1.msra.mxu0 0.0
      %853 = vmatprep.subr.mxu0 0.0
      %854 = vmatpush1.msra.mxu0 0.0
      %855 = vmatprep.subr.mxu0 0.0
      %856 = vmatpush1.msra.mxu0 0.0
      %857 = vmatprep.subr.mxu0 0.0
      %858 = vmatpush1.msra.mxu0 0.0
      %859 = vmatprep.subr.mxu0 0.0
      %860 = vmatpush1.msra.mxu0 0.0
      %861 = vmatprep.subr.mxu0 0.0
      %862 = vmatpush1.msra.mxu0 0.0
      %863 = vmatprep.subr.mxu0 0.0
      %864 = vmatpush1.msra.mxu0 0.0
      %865 = vmatprep.mubr.f32.mxu0 0.0
      %866 = vmatmul.mubr.f32.gmra.mrb[0].mxu0 %v795
      %v867 = vpop.f32.mrb[0].mxu0
      %v868 = vadd.f32 0.0, %v867
      %v869 = vpop.f32.mrb[0].mxu0
      %v870 = vadd.f32 0.0, %v869
      %871 = vdwg.mxu0
      %872 = vst [vmem:[%s308] sm:$0xff] %v868
      %873 = vst [vmem:[%s308 + $0x8] sm:$0xff] %v870
      %v874 = vadd.f32 %v868, %v870
      %875 = vadd.xlane.f32.xlu0 %v874
      %v876 = vpop.xlane.xlu0 %875
      %vm877 = vcmask 7168
      %878 = vst.msk [vmem:[%s312] sm:$0xff] %vm877, %v876
      %v879 = vmul.f32 %v868, %v868
      %v880 = vmul.f32 %v870, %v870
      %v881 = vadd.f32 %v879, %v880
      %882 = vadd.xlane.f32.xlu0 %v881
      %v883 = vpop.xlane.xlu0 %882
      %884 = vst.msk [vmem:[%s316] sm:$0xff] %vm877, %v883
      %p885 = scmp.lt.s32.totalorder %s19, 1
      %s886 = scalar_select %p885, %s19, 1
      %s887 = smul.addr %s886, 2
      %s888 = smul.addr %s887, 8
      %s889 = scalar_lea.vmem %s5, %s888
      %p890 = scmp.lt.s32.totalorder %s19, 1
      %s891 = scalar_select %p890, %s19, 1
      %s892 = smul.addr %s891, 8
      %s893 = scalar_lea.vmem %s6, %s892
      %p894 = scmp.lt.s32.totalorder %s19, 1
      %s895 = scalar_select %p894, %s19, 1
      %s896 = smul.addr %s895, 8
      %s897 = scalar_lea.vmem %s7, %s896
      // Predicated region
      $region41: #{decoder_block_forward.3} parent=39 // pred_check
        %p898 = pneg %p152
      $region42: #{decoder_block_forward.3} parent=39 // pred_check_branch
        %900 = sbr.rel (%p898) target = $region44
      $region43: #{decoder_block_forward.3} parent=39 // pred_region
        _
      $region44: #{decoder_block_forward.3} parent=39 // pred_fallthru
        _
      // Predicated region
      $region45: #{decoder_block_forward.3} parent=39 // pred_check
        %p901 = pneg %p178
      $region46: #{decoder_block_forward.3} parent=39 // pred_check_branch
        %903 = sbr.rel (%p901) target = $region48
      $region47: #{decoder_block_forward.3} parent=39 // pred_region
        _
      $region48: #{decoder_block_forward.3} parent=39 // pred_fallthru
        _
      // Predicated region
      $region49: #{decoder_block_forward.3} parent=39 // pred_check
        %p904 = pneg %p204
      $region50: #{decoder_block_forward.3} parent=39 // pred_check_branch
        %906 = sbr.rel (%p904) target = $region52
      $region51: #{decoder_block_forward.3} parent=39 // pred_region
        _
      $region52: #{decoder_block_forward.3} parent=39 // pred_fallthru
        _
    $region40: #{decoder_block_forward.3} parent=5 // pred_fallthru
      _
    %p907 = scmp.le.s32.totalorder 2, %s14
    // Predicated region
    $region53: #{decoder_block_forward.3} parent=5 // pred_check
      %p908 = pneg %p907
    $region54: #{decoder_block_forward.3} parent=5 // pred_check_branch
      %910 = sbr.rel (%p908) target = $region56
    $region55: #{decoder_block_forward.3} parent=5 // pred_region
      %s911 = ssub.s32 %s14, 2
      // Predicated region
      $region57: #{decoder_block_forward.3} parent=55 // pred_check
        %p912 = pneg %p158
      $region58: #{decoder_block_forward.3} parent=55 // pred_check_branch
        %914 = sbr.rel (%p912) target = $region60
      $region59: #{decoder_block_forward.3} parent=55 // pred_region
        %p915 = scmp.lt.s32.totalorder %s20, 1
        %s916 = scalar_select %p915, %s20, 1
        %s917 = smul.addr %s916, 2
        %s918 = smul.addr %s917, 8
        %s919 = scalar_lea.vmem %s5, %s918
      $region60: #{decoder_block_forward.3} parent=55 // pred_fallthru
        _
      // Predicated region
      $region61: #{decoder_block_forward.3} parent=55 // pred_check
        %p920 = pneg %p184
      $region62: #{decoder_block_forward.3} parent=55 // pred_check_branch
        %922 = sbr.rel (%p920) target = $region64
      $region63: #{decoder_block_forward.3} parent=55 // pred_region
        %p923 = scmp.lt.s32.totalorder %s20, 1
        %s924 = scalar_select %p923, %s20, 1
        %s925 = smul.addr %s924, 8
        %s926 = scalar_lea.vmem %s6, %s925
      $region64: #{decoder_block_forward.3} parent=55 // pred_fallthru
        _
      // Predicated region
      $region65: #{decoder_block_forward.3} parent=55 // pred_check
        %p927 = pneg %p210
      $region66: #{decoder_block_forward.3} parent=55 // pred_check_branch
        %929 = sbr.rel (%p927) target = $region68
      $region67: #{decoder_block_forward.3} parent=55 // pred_region
        %p930 = scmp.lt.s32.totalorder %s20, 1
        %s931 = scalar_select %p930, %s20, 1
        %s932 = smul.addr %s931, 8
        %s933 = scalar_lea.vmem %s7, %s932
      $region68: #{decoder_block_forward.3} parent=55 // pred_fallthru
        _
    $region56: #{decoder_block_forward.3} parent=5 // pred_fallthru
      _
  $region6: #{decoder_block_forward.3} parent=0 // loop_footer
    %s18 = sadd.s32 1, %s14
  $region7: #{decoder_block_forward.3} parent=0 // loop_footer_branch
    %13 = sbr.rel target = $region3
  $region8: #{decoder_block_forward.3} parent=0 // loop_exit
    _

</llo_original>
